<compile_context>
chip_gen: v7x
topology: tpu7x:2x2x1
jax: 0.10.0
libtpu: 0.0.40
codegen_flags: <defaults>
</compile_context>

<pallas_src>
import jax
import jax.numpy as jnp
from jax.experimental import pallas as pl
from jax.experimental.pallas import tpu as pltpu

# ---- small synthetic "CLIP visual" hyper-parameters -------------------------
IMAGE = 16            # input spatial size
PATCH = 4             # conv1 kernel == stride
CHANS = 3             # RGB
WIDTH = 32            # transformer hidden dim
HEADS = 4
HEAD_DIM = WIDTH // HEADS
MLP = 4 * WIDTH
LAYERS = 12           # CLIP visual has 12 resblocks (hooks 0..11)
EMBED = 16            # final projection dim (fc_features dim)
GRIDP = IMAGE // PATCH
NPATCH = GRIDP * GRIDP
SEQ = NPATCH + 1      # class token + patches
SEQ_PAD = 24          # SEQ padded up to a multiple of 8 (clean sublane tiles)
EPS = 1e-5

# Row indices inside the packed per-layer vector buffer [LAYERS, 8, 128].
_R_LN1G, _R_LN1B, _R_BQKV, _R_BO, _R_LN2G, _R_LN2B, _R_B1, _R_B2 = range(8)


# ---------------------------------------------------------------------------
# in-kernel helpers
# ---------------------------------------------------------------------------
def _layer_norm(x, g, b):
    # x: [S, D] f32, g/b: [1, D] f32
    mu = jnp.mean(x, axis=-1, keepdims=True)
    var = jnp.mean((x - mu) ** 2, axis=-1, keepdims=True)
    return (x - mu) * jax.lax.rsqrt(var + EPS) * g + b


# ---------------------------------------------------------------------------
# Fused encoder kernel: all 12 resblocks for one image per grid step.
# Weights are fully resident in VMEM; hidden state is the fori_loop carry.
# ---------------------------------------------------------------------------
def _encoder_kernel(x0_ref, wqkv_ref, wo_ref, w1_ref, w2_ref, vecs_ref, fm_ref):
    # padded-key mask bias, generated in-kernel once (loop invariant)
    col = jax.lax.broadcasted_iota(jnp.int32, (1, SEQ_PAD), 1)
    kbias = jnp.where(col < SEQ, 0.0, -1e30).astype(jnp.float32)   # [1, SEQ_PAD]

    def layer(l, x):
        vec = vecs_ref[l]                                     # [8, 128] f32
        ln1_g = vec[_R_LN1G:_R_LN1G + 1, :WIDTH]
        ln1_b = vec[_R_LN1B:_R_LN1B + 1, :WIDTH]
        bqkv  = vec[_R_BQKV:_R_BQKV + 1, :3 * WIDTH]          # scale already folded in
        bo    = vec[_R_BO:_R_BO + 1, :WIDTH]
        ln2_g = vec[_R_LN2G:_R_LN2G + 1, :WIDTH]
        ln2_b = vec[_R_LN2B:_R_LN2B + 1, :WIDTH]
        b1    = vec[_R_B1:_R_B1 + 1, :MLP]
        b2    = vec[_R_B2:_R_B2 + 1, :WIDTH]

        # --- attention branch: one fused QKV matmul, per-head static slices ---
        hn = _layer_norm(x, ln1_g, ln1_b)
        qkv = jnp.dot(hn.astype(jnp.bfloat16), wqkv_ref[l],
                      preferred_element_type=jnp.float32) + bqkv       # [S, 3D]
        qkv = qkv.astype(jnp.bfloat16)

        ctx = []
        for hh in range(HEADS):                                # static unroll over heads
            q = qkv[:, hh * HEAD_DIM:(hh + 1) * HEAD_DIM]
            k = qkv[:, WIDTH + hh * HEAD_DIM:WIDTH + (hh + 1) * HEAD_DIM]
            v = qkv[:, 2 * WIDTH + hh * HEAD_DIM:2 * WIDTH + (hh + 1) * HEAD_DIM]
            s = jax.lax.dot_general(q, k, (((1,), (1,)), ((), ())),
                                    preferred_element_type=jnp.float32)  # [S, S]
            s = s + kbias                                      # mask padded keys
            s = s - jnp.max(s, axis=-1, keepdims=True)
            p = jnp.exp(s)
            p = p * pl.reciprocal(jnp.sum(p, axis=-1, keepdims=True), approx=True)
            ctx.append(jnp.dot(p.astype(jnp.bfloat16), v,
                               preferred_element_type=jnp.float32))      # [S, Dh]
        ctx = jnp.concatenate(ctx, axis=-1).astype(jnp.bfloat16)          # [S, D]
        x = x + jnp.dot(ctx, wo_ref[l], preferred_element_type=jnp.float32) + bo

        # --- MLP branch (QuickGELU as in CLIP), elementwise math in f32 -------
        hn2 = _layer_norm(x, ln2_g, ln2_b)
        m = jnp.dot(hn2.astype(jnp.bfloat16), w1_ref[l],
                    preferred_element_type=jnp.float32) + b1
        m = m * jax.nn.sigmoid(1.702 * m)
        x = x + jnp.dot(m.astype(jnp.bfloat16), w2_ref[l],
                        preferred_element_type=jnp.float32) + b2

        fm_ref[l] = x                                          # hook output, layer l
        return x

    jax.lax.fori_loop(0, LAYERS, layer, x0_ref[...])


def encoder_apply(h, params):
    """h: [B, SEQ_PAD, WIDTH] f32 (ln_pre'd). Returns [B, LAYERS, SEQ_PAD, WIDTH]."""
    B = h.shape[0]

    def resident(shape):   # whole array resident in VMEM (same block every grid step)
        return pl.BlockSpec(shape, lambda b, _n=len(shape): (0,) * _n)

    return pl.pallas_call(
        _encoder_kernel,
        out_shape=jax.ShapeDtypeStruct((B, LAYERS, SEQ_PAD, WIDTH), jnp.float32),
        grid=(B,),
        in_specs=[
            pl.BlockSpec((None, SEQ_PAD, WIDTH), lambda b: (b, 0, 0)),  # h0 (per image)
            resident((LAYERS, WIDTH, 3 * WIDTH)),                       # fused QKV weights
            resident((LAYERS, WIDTH, WIDTH)),                           # fused out-proj
            resident((LAYERS, WIDTH, MLP)),                             # w1
            resident((LAYERS, MLP, WIDTH)),                             # w2
            resident((LAYERS, 8, 128)),                                 # packed small vectors
        ],
        out_specs=pl.BlockSpec((None, LAYERS, SEQ_PAD, WIDTH), lambda b: (b, 0, 0, 0)),
        compiler_params=pltpu.CompilerParams(
            dimension_semantics=("parallel",)),     # batch axis → 2nd TC on v7x
    )(h, params['wqkv'], params['wo'], params['w1'], params['w2'], params['vecs'])


# ---------------------------------------------------------------------------
# Full forward == CLIPVisualEncoder.forward
#   returns (fc_features [B, EMBED] float32, featuremaps: list of 12 [B, SEQ, WIDTH])
# ---------------------------------------------------------------------------
def clip_visual_encoder_forward(x, params):
    B = x.shape[0]

    # conv1 (kernel == stride == PATCH, no bias) as patch-extract + tiny matmul (XLA)
    xp = x.reshape(B, CHANS, GRIDP, PATCH, GRIDP, PATCH)
    xp = xp.transpose(0, 2, 4, 1, 3, 5).reshape(B * NPATCH, CHANS * PATCH * PATCH)
    w = params['conv_w'].reshape(WIDTH, CHANS * PATCH * PATCH).T
    emb = (xp @ w).reshape(B, NPATCH, WIDTH)

    cls = jnp.broadcast_to(params['class_emb'][None, None, :], (B, 1, WIDTH))
    h = jnp.concatenate([cls, emb], axis=1) + params['pos_emb'][None]   # [B, SEQ, D]

    # ln_pre (not hooked; tiny → plain XLA)
    mu = jnp.mean(h, axis=-1, keepdims=True)
    var = jnp.mean((h - mu) ** 2, axis=-1, keepdims=True)
    h = (h - mu) * jax.lax.rsqrt(var + EPS) * params['ln_pre_g'] + params['ln_pre_b']

    # pad the sequence to a multiple of 8; padded key columns are masked in-kernel
    h = jnp.pad(h, ((0, 0), (0, SEQ_PAD - SEQ), (0, 0))).astype(jnp.float32)

    fms = encoder_apply(h, params)                    # [B, LAYERS, SEQ_PAD, WIDTH]
    featuremaps = [fms[:, i, :SEQ, :] for i in range(LAYERS)]

    # ln_post + projection on the class token (tiny head; plain XLA)
    cls_tok = featuremaps[-1][:, 0, :]                # [B, WIDTH]
    mu = jnp.mean(cls_tok, axis=-1, keepdims=True)
    var = jnp.mean((cls_tok - mu) ** 2, axis=-1, keepdims=True)
    hN = (cls_tok - mu) * jax.lax.rsqrt(var + EPS) * params['ln_post_g'] + params['ln_post_b']
    fc = (hN @ params['proj']).astype(jnp.float32)    # .float()
    return fc, featuremaps


# ---------------------------------------------------------------------------
# Deterministic synthetic parameters, pre-packed for the kernel:
#   wqkv [L, D, 3D] (softmax scale folded into Q columns), wo [L, D, D],
#   w1/w2, and one [L, 8, 128] f32 buffer for all small per-layer vectors.
# TODO(synk): real module loads a pretrained CLIP checkpoint; weights are synthesized.
# ---------------------------------------------------------------------------
def init_params(key):
    keys = jax.random.split(key, 10)

    def nrm(k, shape, scale=0.02, dtype=jnp.float32):
        return (scale * jax.random.normal(k, shape)).astype(dtype)

    BF = jnp.bfloat16
    scale = 1.0 / float(HEAD_DIM) ** 0.5

    # fused QKV weight / bias with the 1/sqrt(head_dim) scale folded into the Q part
    wqkv = nrm(keys[4], (LAYERS, WIDTH, 3 * WIDTH))
    wqkv = wqkv.at[:, :, :WIDTH].multiply(scale)
    bqkv = nrm(keys[5], (LAYERS, 3 * WIDTH))
    bqkv = bqkv.at[:, :WIDTH].multiply(scale)

    ln1_g = jnp.ones((LAYERS, WIDTH), jnp.float32)
    ln1_b = jnp.zeros((LAYERS, WIDTH), jnp.float32)
    ln2_g = jnp.ones((LAYERS, WIDTH), jnp.float32)
    ln2_b = jnp.zeros((LAYERS, WIDTH), jnp.float32)
    bo = jnp.zeros((LAYERS, WIDTH), jnp.float32)
    b1 = jnp.zeros((LAYERS, MLP), jnp.float32)
    b2 = jnp.zeros((LAYERS, WIDTH), jnp.float32)

    def pad128(v):
        return jnp.pad(v.astype(jnp.float32), ((0, 0), (0, 128 - v.shape[-1])))

    # row order must match _R_* constants
    vecs = jnp.stack([pad128(ln1_g), pad128(ln1_b), pad128(bqkv), pad128(bo),
                      pad128(ln2_g), pad128(ln2_b), pad128(b1), pad128(b2)],
                     axis=1)                                   # [LAYERS, 8, 128]

    params = {
        'conv_w': nrm(keys[0], (WIDTH, CHANS, PATCH, PATCH)),
        'class_emb': nrm(keys[1], (WIDTH,)),
        'pos_emb': nrm(keys[2], (SEQ, WIDTH)),
        'ln_pre_g': jnp.ones((WIDTH,), jnp.float32),
        'ln_pre_b': jnp.zeros((WIDTH,), jnp.float32),
        'ln_post_g': jnp.ones((WIDTH,), jnp.float32),
        'ln_post_b': jnp.zeros((WIDTH,), jnp.float32),
        'proj': nrm(keys[3], (WIDTH, EMBED)),
        # packed transformer weights (MXU operands in bf16)
        'wqkv': wqkv.astype(BF),
        'wo': nrm(keys[6], (LAYERS, WIDTH, WIDTH), dtype=BF),
        'w1': nrm(keys[7], (LAYERS, WIDTH, MLP), dtype=BF),
        'w2': nrm(keys[8], (LAYERS, MLP, WIDTH), dtype=BF),
        'vecs': vecs,
    }
    return params


if __name__ == "__main__":
    B = 2
    x = jax.random.normal(jax.random.PRNGKey(0), (B, CHANS, IMAGE, IMAGE),
                          dtype=jnp.float32)
    params = init_params(jax.random.PRNGKey(1))

    fwd = jax.jit(clip_visual_encoder_forward)
    fc_features, featuremaps = fwd(x, params)
    jax.block_until_ready(fc_features)
    jax.block_until_ready(featuremaps)

    assert fc_features.shape == (B, EMBED) and fc_features.dtype == jnp.float32
    assert len(featuremaps) == LAYERS
    assert all(f.shape == (B, SEQ, WIDTH) for f in featuremaps)
    assert all(bool(jnp.all(jnp.isfinite(f))) for f in featuremaps)
    assert bool(jnp.all(jnp.isfinite(fc_features)))
    print("KERNEL_OK")
</pallas_src>

<mosaic_0001>
module attributes {stable_mosaic.version = 11 : i64} {
  func.func @_encoder_kernel(%arg0: i32, %arg1: memref<1x24x32xf32, #tpu.memory_space<vmem>>, %arg2: memref<12x32x96xbf16, #tpu.memory_space<vmem>>, %arg3: memref<12x32x32xbf16, #tpu.memory_space<vmem>>, %arg4: memref<12x32x128xbf16, #tpu.memory_space<vmem>>, %arg5: memref<12x128x32xbf16, #tpu.memory_space<vmem>>, %arg6: memref<12x8x128xf32, #tpu.memory_space<vmem>>, %arg7: memref<1x12x24x32xf32, #tpu.memory_space<vmem>>) attributes {dimension_semantics = [#tpu.dimension_semantics<parallel>], iteration_bounds = array<i64: 2>, scalar_prefetch = 0 : i64, scratch_operands = 0 : i64, tpu.core_type = #tpu.core_type<tc>, window_params = [{transform_indices = @transform_0, window_bounds = array<i64: 1, 24, 32>}, {pipeline_mode = #tpu.pipeline_mode<synchronous>, transform_indices = @transform_1, window_bounds = array<i64: 12, 32, 96>}, {pipeline_mode = #tpu.pipeline_mode<synchronous>, transform_indices = @transform_2, window_bounds = array<i64: 12, 32, 32>}, {pipeline_mode = #tpu.pipeline_mode<synchronous>, transform_indices = @transform_3, window_bounds = array<i64: 12, 32, 128>}, {pipeline_mode = #tpu.pipeline_mode<synchronous>, transform_indices = @transform_4, window_bounds = array<i64: 12, 128, 32>}, {pipeline_mode = #tpu.pipeline_mode<synchronous>, transform_indices = @transform_5, window_bounds = array<i64: 12, 8, 128>}, {transform_indices = @transform_6, window_bounds = array<i64: 1, 12, 24, 32>}]} {
    %0 = tpu.iota {dimensions = array<i32: 1>} : vector<1x24xi32>
    %c17_i32 = arith.constant 17 : i32
    %1 = vector.broadcast %c17_i32 : i32 to vector<1x24xi32>
    %2 = arith.cmpi slt, %0, %1 : vector<1x24xi32>
    %cst = arith.constant 0.000000e+00 : f32
    %cst_0 = arith.constant -1.000000e+30 : f32
    %3 = vector.broadcast %cst : f32 to vector<1x24xf32>
    %4 = vector.broadcast %cst_0 : f32 to vector<1x24xf32>
    %5 = arith.select %2, %3, %4 : vector<1x24xi1>, vector<1x24xf32>
    %c0 = arith.constant 0 : index
    %c0_1 = arith.constant 0 : index
    %c0_2 = arith.constant 0 : index
    %6 = vector.load %arg1[%c0, %c0_1, %c0_2] : memref<1x24x32xf32, #tpu.memory_space<vmem>>, vector<1x24x32xf32>
    %7 = vector.shape_cast %6 : vector<1x24x32xf32> to vector<24x32xf32>
    %c0_i32 = arith.constant 0 : i32
    %c12_i32 = arith.constant 12 : i32
    %8 = arith.addi %c0_i32, %c12_i32 : i32
    %c1_i32 = arith.constant 1 : i32
    %9 = scf.for %arg8 = %c0_i32 to %8 step %c1_i32 iter_args(%arg9 = %7) -> (vector<24x32xf32>)  : i32 {
      %10 = arith.index_cast %arg8 : i32 to index
      %c0_4 = arith.constant 0 : index
      %c0_5 = arith.constant 0 : index
      %11 = vector.load %arg6[%10, %c0_4, %c0_5] : memref<12x8x128xf32, #tpu.memory_space<vmem>>, vector<1x8x128xf32>
      %12 = vector.shape_cast %11 : vector<1x8x128xf32> to vector<8x128xf32>
      %13 = vector.extract_strided_slice %12 {offsets = [0, 0], sizes = [1, 32], strides = [1, 1]} : vector<8x128xf32> to vector<1x32xf32>
      %14 = vector.extract_strided_slice %12 {offsets = [1, 0], sizes = [1, 32], strides = [1, 1]} : vector<8x128xf32> to vector<1x32xf32>
      %15 = vector.extract_strided_slice %12 {offsets = [2, 0], sizes = [1, 96], strides = [1, 1]} : vector<8x128xf32> to vector<1x96xf32>
      %16 = vector.extract_strided_slice %12 {offsets = [3, 0], sizes = [1, 32], strides = [1, 1]} : vector<8x128xf32> to vector<1x32xf32>
      %17 = vector.extract_strided_slice %12 {offsets = [4, 0], sizes = [1, 32], strides = [1, 1]} : vector<8x128xf32> to vector<1x32xf32>
      %18 = vector.extract_strided_slice %12 {offsets = [5, 0], sizes = [1, 32], strides = [1, 1]} : vector<8x128xf32> to vector<1x32xf32>
      %19 = vector.extract_strided_slice %12 {offsets = [6, 0], sizes = [1, 128], strides = [1, 1]} : vector<8x128xf32> to vector<1x128xf32>
      %20 = vector.extract_strided_slice %12 {offsets = [7, 0], sizes = [1, 32], strides = [1, 1]} : vector<8x128xf32> to vector<1x32xf32>
      %cst_6 = arith.constant dense<0.000000e+00> : vector<24xf32>
      %21 = vector.multi_reduction <add>, %arg9, %cst_6 [1] : vector<24x32xf32> to vector<24xf32>
      %22 = vector.shape_cast %21 : vector<24xf32> to vector<24x1xf32>
      %cst_7 = arith.constant 3.200000e+01 : f32
      %23 = vector.broadcast %cst_7 : f32 to vector<24x1xf32>
      %24 = arith.divf %22, %23 : vector<24x1xf32>
      %25 = vector.broadcast %24 : vector<24x1xf32> to vector<24x32xf32>
      %26 = arith.subf %arg9, %25 : vector<24x32xf32>
      %27 = arith.mulf %26, %26 : vector<24x32xf32>
      %cst_8 = arith.constant dense<0.000000e+00> : vector<24xf32>
      %28 = vector.multi_reduction <add>, %27, %cst_8 [1] : vector<24x32xf32> to vector<24xf32>
      %29 = vector.shape_cast %28 : vector<24xf32> to vector<24x1xf32>
      %cst_9 = arith.constant 3.200000e+01 : f32
      %30 = vector.broadcast %cst_9 : f32 to vector<24x1xf32>
      %31 = arith.divf %29, %30 : vector<24x1xf32>
      %32 = vector.broadcast %24 : vector<24x1xf32> to vector<24x32xf32>
      %33 = arith.subf %arg9, %32 : vector<24x32xf32>
      %cst_10 = arith.constant 9.99999974E-6 : f32
      %34 = vector.broadcast %cst_10 : f32 to vector<24x1xf32>
      %35 = arith.addf %31, %34 : vector<24x1xf32>
      %36 = math.rsqrt %35 : vector<24x1xf32>
      %37 = vector.broadcast %36 : vector<24x1xf32> to vector<24x32xf32>
      %38 = arith.mulf %33, %37 : vector<24x32xf32>
      %39 = vector.broadcast %13 : vector<1x32xf32> to vector<24x32xf32>
      %40 = arith.mulf %38, %39 : vector<24x32xf32>
      %41 = vector.broadcast %14 : vector<1x32xf32> to vector<24x32xf32>
      %42 = arith.addf %40, %41 : vector<24x32xf32>
      %43 = arith.truncf %42 : vector<24x32xf32> to vector<24x32xbf16>
      %44 = arith.index_cast %arg8 : i32 to index
      %c0_11 = arith.constant 0 : index
      %c0_12 = arith.constant 0 : index
      %45 = vector.load %arg2[%44, %c0_11, %c0_12] : memref<12x32x96xbf16, #tpu.memory_space<vmem>>, vector<1x32x96xbf16>
      %46 = vector.shape_cast %45 : vector<1x32x96xbf16> to vector<32x96xbf16>
      %cst_13 = arith.constant dense<0.000000e+00> : vector<24x96xf32>
      %47 = tpu.matmul %43, %46, %cst_13 {dimension_numbers = #tpu.dot_dimension_numbers<[1], [0], [0], [1], [0, 0, 1, 1], [], []>} : vector<24x32xbf16>, vector<32x96xbf16>, vector<24x96xf32> -> vector<24x96xf32>
      %48 = vector.broadcast %15 : vector<1x96xf32> to vector<24x96xf32>
      %49 = arith.addf %47, %48 : vector<24x96xf32>
      %50 = arith.truncf %49 : vector<24x96xf32> to vector<24x96xbf16>
      %51 = vector.extract_strided_slice %50 {offsets = [0, 0], sizes = [24, 8], strides = [1, 1]} : vector<24x96xbf16> to vector<24x8xbf16>
      %52 = vector.extract_strided_slice %50 {offsets = [0, 32], sizes = [24, 8], strides = [1, 1]} : vector<24x96xbf16> to vector<24x8xbf16>
      %53 = vector.extract_strided_slice %50 {offsets = [0, 64], sizes = [24, 8], strides = [1, 1]} : vector<24x96xbf16> to vector<24x8xbf16>
      %cst_14 = arith.constant dense<0.000000e+00> : vector<24x24xf32>
      %54 = tpu.matmul %51, %52, %cst_14 {dimension_numbers = #tpu.dot_dimension_numbers<[1], [1], [0], [0], [0, 0, 1, 0], [], []>} : vector<24x8xbf16>, vector<24x8xbf16>, vector<24x24xf32> -> vector<24x24xf32>
      %55 = vector.broadcast %5 : vector<1x24xf32> to vector<24x24xf32>
      %56 = arith.addf %54, %55 : vector<24x24xf32>
      %cst_15 = arith.constant dense<0xFF800000> : vector<24xf32>
      %57 = vector.multi_reduction <maximumf>, %56, %cst_15 [1] : vector<24x24xf32> to vector<24xf32>
      %58 = vector.shape_cast %57 : vector<24xf32> to vector<24x1xf32>
      %59 = vector.broadcast %58 : vector<24x1xf32> to vector<24x24xf32>
      %60 = arith.subf %56, %59 : vector<24x24xf32>
      %61 = math.exp %60 : vector<24x24xf32>
      %cst_16 = arith.constant dense<0.000000e+00> : vector<24xf32>
      %62 = vector.multi_reduction <add>, %61, %cst_16 [1] : vector<24x24xf32> to vector<24xf32>
      %63 = vector.shape_cast %62 : vector<24xf32> to vector<24x1xf32>
      %64 = tpu.reciprocal %63 {approx = true} : vector<24x1xf32> -> vector<24x1xf32>
      %65 = vector.broadcast %64 : vector<24x1xf32> to vector<24x24xf32>
      %66 = arith.mulf %61, %65 : vector<24x24xf32>
      %67 = arith.truncf %66 : vector<24x24xf32> to vector<24x24xbf16>
      %cst_17 = arith.constant dense<0.000000e+00> : vector<24x8xf32>
      %68 = tpu.matmul %67, %53, %cst_17 {dimension_numbers = #tpu.dot_dimension_numbers<[1], [0], [0], [1], [0, 0, 1, 1], [], []>} : vector<24x24xbf16>, vector<24x8xbf16>, vector<24x8xf32> -> vector<24x8xf32>
      %69 = vector.extract_strided_slice %50 {offsets = [0, 8], sizes = [24, 8], strides = [1, 1]} : vector<24x96xbf16> to vector<24x8xbf16>
      %70 = vector.extract_strided_slice %50 {offsets = [0, 40], sizes = [24, 8], strides = [1, 1]} : vector<24x96xbf16> to vector<24x8xbf16>
      %71 = vector.extract_strided_slice %50 {offsets = [0, 72], sizes = [24, 8], strides = [1, 1]} : vector<24x96xbf16> to vector<24x8xbf16>
      %cst_18 = arith.constant dense<0.000000e+00> : vector<24x24xf32>
      %72 = tpu.matmul %69, %70, %cst_18 {dimension_numbers = #tpu.dot_dimension_numbers<[1], [1], [0], [0], [0, 0, 1, 0], [], []>} : vector<24x8xbf16>, vector<24x8xbf16>, vector<24x24xf32> -> vector<24x24xf32>
      %73 = vector.broadcast %5 : vector<1x24xf32> to vector<24x24xf32>
      %74 = arith.addf %72, %73 : vector<24x24xf32>
      %cst_19 = arith.constant dense<0xFF800000> : vector<24xf32>
      %75 = vector.multi_reduction <maximumf>, %74, %cst_19 [1] : vector<24x24xf32> to vector<24xf32>
      %76 = vector.shape_cast %75 : vector<24xf32> to vector<24x1xf32>
      %77 = vector.broadcast %76 : vector<24x1xf32> to vector<24x24xf32>
      %78 = arith.subf %74, %77 : vector<24x24xf32>
      %79 = math.exp %78 : vector<24x24xf32>
      %cst_20 = arith.constant dense<0.000000e+00> : vector<24xf32>
      %80 = vector.multi_reduction <add>, %79, %cst_20 [1] : vector<24x24xf32> to vector<24xf32>
      %81 = vector.shape_cast %80 : vector<24xf32> to vector<24x1xf32>
      %82 = tpu.reciprocal %81 {approx = true} : vector<24x1xf32> -> vector<24x1xf32>
      %83 = vector.broadcast %82 : vector<24x1xf32> to vector<24x24xf32>
      %84 = arith.mulf %79, %83 : vector<24x24xf32>
      %85 = arith.truncf %84 : vector<24x24xf32> to vector<24x24xbf16>
      %cst_21 = arith.constant dense<0.000000e+00> : vector<24x8xf32>
      %86 = tpu.matmul %85, %71, %cst_21 {dimension_numbers = #tpu.dot_dimension_numbers<[1], [0], [0], [1], [0, 0, 1, 1], [], []>} : vector<24x24xbf16>, vector<24x8xbf16>, vector<24x8xf32> -> vector<24x8xf32>
      %87 = vector.extract_strided_slice %50 {offsets = [0, 16], sizes = [24, 8], strides = [1, 1]} : vector<24x96xbf16> to vector<24x8xbf16>
      %88 = vector.extract_strided_slice %50 {offsets = [0, 48], sizes = [24, 8], strides = [1, 1]} : vector<24x96xbf16> to vector<24x8xbf16>
      %89 = vector.extract_strided_slice %50 {offsets = [0, 80], sizes = [24, 8], strides = [1, 1]} : vector<24x96xbf16> to vector<24x8xbf16>
      %cst_22 = arith.constant dense<0.000000e+00> : vector<24x24xf32>
      %90 = tpu.matmul %87, %88, %cst_22 {dimension_numbers = #tpu.dot_dimension_numbers<[1], [1], [0], [0], [0, 0, 1, 0], [], []>} : vector<24x8xbf16>, vector<24x8xbf16>, vector<24x24xf32> -> vector<24x24xf32>
      %91 = vector.broadcast %5 : vector<1x24xf32> to vector<24x24xf32>
      %92 = arith.addf %90, %91 : vector<24x24xf32>
      %cst_23 = arith.constant dense<0xFF800000> : vector<24xf32>
      %93 = vector.multi_reduction <maximumf>, %92, %cst_23 [1] : vector<24x24xf32> to vector<24xf32>
      %94 = vector.shape_cast %93 : vector<24xf32> to vector<24x1xf32>
      %95 = vector.broadcast %94 : vector<24x1xf32> to vector<24x24xf32>
      %96 = arith.subf %92, %95 : vector<24x24xf32>
      %97 = math.exp %96 : vector<24x24xf32>
      %cst_24 = arith.constant dense<0.000000e+00> : vector<24xf32>
      %98 = vector.multi_reduction <add>, %97, %cst_24 [1] : vector<24x24xf32> to vector<24xf32>
      %99 = vector.shape_cast %98 : vector<24xf32> to vector<24x1xf32>
      %100 = tpu.reciprocal %99 {approx = true} : vector<24x1xf32> -> vector<24x1xf32>
      %101 = vector.broadcast %100 : vector<24x1xf32> to vector<24x24xf32>
      %102 = arith.mulf %97, %101 : vector<24x24xf32>
      %103 = arith.truncf %102 : vector<24x24xf32> to vector<24x24xbf16>
      %cst_25 = arith.constant dense<0.000000e+00> : vector<24x8xf32>
      %104 = tpu.matmul %103, %89, %cst_25 {dimension_numbers = #tpu.dot_dimension_numbers<[1], [0], [0], [1], [0, 0, 1, 1], [], []>} : vector<24x24xbf16>, vector<24x8xbf16>, vector<24x8xf32> -> vector<24x8xf32>
      %105 = vector.extract_strided_slice %50 {offsets = [0, 24], sizes = [24, 8], strides = [1, 1]} : vector<24x96xbf16> to vector<24x8xbf16>
      %106 = vector.extract_strided_slice %50 {offsets = [0, 56], sizes = [24, 8], strides = [1, 1]} : vector<24x96xbf16> to vector<24x8xbf16>
      %107 = vector.extract_strided_slice %50 {offsets = [0, 88], sizes = [24, 8], strides = [1, 1]} : vector<24x96xbf16> to vector<24x8xbf16>
      %cst_26 = arith.constant dense<0.000000e+00> : vector<24x24xf32>
      %108 = tpu.matmul %105, %106, %cst_26 {dimension_numbers = #tpu.dot_dimension_numbers<[1], [1], [0], [0], [0, 0, 1, 0], [], []>} : vector<24x8xbf16>, vector<24x8xbf16>, vector<24x24xf32> -> vector<24x24xf32>
      %109 = vector.broadcast %5 : vector<1x24xf32> to vector<24x24xf32>
      %110 = arith.addf %108, %109 : vector<24x24xf32>
      %cst_27 = arith.constant dense<0xFF800000> : vector<24xf32>
      %111 = vector.multi_reduction <maximumf>, %110, %cst_27 [1] : vector<24x24xf32> to vector<24xf32>
      %112 = vector.shape_cast %111 : vector<24xf32> to vector<24x1xf32>
      %113 = vector.broadcast %112 : vector<24x1xf32> to vector<24x24xf32>
      %114 = arith.subf %110, %113 : vector<24x24xf32>
      %115 = math.exp %114 : vector<24x24xf32>
      %cst_28 = arith.constant dense<0.000000e+00> : vector<24xf32>
      %116 = vector.multi_reduction <add>, %115, %cst_28 [1] : vector<24x24xf32> to vector<24xf32>
      %117 = vector.shape_cast %116 : vector<24xf32> to vector<24x1xf32>
      %118 = tpu.reciprocal %117 {approx = true} : vector<24x1xf32> -> vector<24x1xf32>
      %119 = vector.broadcast %118 : vector<24x1xf32> to vector<24x24xf32>
      %120 = arith.mulf %115, %119 : vector<24x24xf32>
      %121 = arith.truncf %120 : vector<24x24xf32> to vector<24x24xbf16>
      %cst_29 = arith.constant dense<0.000000e+00> : vector<24x8xf32>
      %122 = tpu.matmul %121, %107, %cst_29 {dimension_numbers = #tpu.dot_dimension_numbers<[1], [0], [0], [1], [0, 0, 1, 1], [], []>} : vector<24x24xbf16>, vector<24x8xbf16>, vector<24x8xf32> -> vector<24x8xf32>
      %123 = tpu.concatenate %68, %86, %104, %122 in 1 : vector<24x8xf32>, vector<24x8xf32>, vector<24x8xf32>, vector<24x8xf32> -> vector<24x32xf32>
      %124 = arith.truncf %123 : vector<24x32xf32> to vector<24x32xbf16>
      %125 = arith.index_cast %arg8 : i32 to index
      %c0_30 = arith.constant 0 : index
      %c0_31 = arith.constant 0 : index
      %126 = vector.load %arg3[%125, %c0_30, %c0_31] : memref<12x32x32xbf16, #tpu.memory_space<vmem>>, vector<1x32x32xbf16>
      %127 = vector.shape_cast %126 : vector<1x32x32xbf16> to vector<32x32xbf16>
      %cst_32 = arith.constant dense<0.000000e+00> : vector<24x32xf32>
      %128 = tpu.matmul %124, %127, %cst_32 {dimension_numbers = #tpu.dot_dimension_numbers<[1], [0], [0], [1], [0, 0, 1, 1], [], []>} : vector<24x32xbf16>, vector<32x32xbf16>, vector<24x32xf32> -> vector<24x32xf32>
      %129 = arith.addf %arg9, %128 : vector<24x32xf32>
      %130 = vector.broadcast %16 : vector<1x32xf32> to vector<24x32xf32>
      %131 = arith.addf %129, %130 : vector<24x32xf32>
      %cst_33 = arith.constant dense<0.000000e+00> : vector<24xf32>
      %132 = vector.multi_reduction <add>, %131, %cst_33 [1] : vector<24x32xf32> to vector<24xf32>
      %133 = vector.shape_cast %132 : vector<24xf32> to vector<24x1xf32>
      %cst_34 = arith.constant 3.200000e+01 : f32
      %134 = vector.broadcast %cst_34 : f32 to vector<24x1xf32>
      %135 = arith.divf %133, %134 : vector<24x1xf32>
      %136 = vector.broadcast %135 : vector<24x1xf32> to vector<24x32xf32>
      %137 = arith.subf %131, %136 : vector<24x32xf32>
      %138 = arith.mulf %137, %137 : vector<24x32xf32>
      %cst_35 = arith.constant dense<0.000000e+00> : vector<24xf32>
      %139 = vector.multi_reduction <add>, %138, %cst_35 [1] : vector<24x32xf32> to vector<24xf32>
      %140 = vector.shape_cast %139 : vector<24xf32> to vector<24x1xf32>
      %cst_36 = arith.constant 3.200000e+01 : f32
      %141 = vector.broadcast %cst_36 : f32 to vector<24x1xf32>
      %142 = arith.divf %140, %141 : vector<24x1xf32>
      %143 = vector.broadcast %135 : vector<24x1xf32> to vector<24x32xf32>
      %144 = arith.subf %131, %143 : vector<24x32xf32>
      %cst_37 = arith.constant 9.99999974E-6 : f32
      %145 = vector.broadcast %cst_37 : f32 to vector<24x1xf32>
      %146 = arith.addf %142, %145 : vector<24x1xf32>
      %147 = math.rsqrt %146 : vector<24x1xf32>
      %148 = vector.broadcast %147 : vector<24x1xf32> to vector<24x32xf32>
      %149 = arith.mulf %144, %148 : vector<24x32xf32>
      %150 = vector.broadcast %17 : vector<1x32xf32> to vector<24x32xf32>
      %151 = arith.mulf %149, %150 : vector<24x32xf32>
      %152 = vector.broadcast %18 : vector<1x32xf32> to vector<24x32xf32>
      %153 = arith.addf %151, %152 : vector<24x32xf32>
      %154 = arith.truncf %153 : vector<24x32xf32> to vector<24x32xbf16>
      %155 = arith.index_cast %arg8 : i32 to index
      %c0_38 = arith.constant 0 : index
      %c0_39 = arith.constant 0 : index
      %156 = vector.load %arg4[%155, %c0_38, %c0_39] : memref<12x32x128xbf16, #tpu.memory_space<vmem>>, vector<1x32x128xbf16>
      %157 = vector.shape_cast %156 : vector<1x32x128xbf16> to vector<32x128xbf16>
      %cst_40 = arith.constant dense<0.000000e+00> : vector<24x128xf32>
      %158 = tpu.matmul %154, %157, %cst_40 {dimension_numbers = #tpu.dot_dimension_numbers<[1], [0], [0], [1], [0, 0, 1, 1], [], []>} : vector<24x32xbf16>, vector<32x128xbf16>, vector<24x128xf32> -> vector<24x128xf32>
      %159 = vector.broadcast %19 : vector<1x128xf32> to vector<24x128xf32>
      %160 = arith.addf %158, %159 : vector<24x128xf32>
      %cst_41 = arith.constant 1.702000e+00 : f32
      %161 = vector.broadcast %cst_41 : f32 to vector<24x128xf32>
      %162 = arith.mulf %161, %160 : vector<24x128xf32>
      %163 = arith.negf %162 : vector<24x128xf32>
      %164 = math.exp %163 : vector<24x128xf32>
      %cst_42 = arith.constant 1.000000e+00 : f32
      %165 = vector.broadcast %cst_42 : f32 to vector<24x128xf32>
      %166 = arith.addf %165, %164 : vector<24x128xf32>
      %167 = arith.divf %165, %166 : vector<24x128xf32>
      %168 = arith.mulf %160, %167 : vector<24x128xf32>
      %169 = arith.truncf %168 : vector<24x128xf32> to vector<24x128xbf16>
      %170 = arith.index_cast %arg8 : i32 to index
      %c0_43 = arith.constant 0 : index
      %c0_44 = arith.constant 0 : index
      %171 = vector.load %arg5[%170, %c0_43, %c0_44] : memref<12x128x32xbf16, #tpu.memory_space<vmem>>, vector<1x128x32xbf16>
      %172 = vector.shape_cast %171 : vector<1x128x32xbf16> to vector<128x32xbf16>
      %cst_45 = arith.constant dense<0.000000e+00> : vector<24x32xf32>
      %173 = tpu.matmul %169, %172, %cst_45 {dimension_numbers = #tpu.dot_dimension_numbers<[1], [0], [0], [1], [0, 0, 1, 1], [], []>} : vector<24x128xbf16>, vector<128x32xbf16>, vector<24x32xf32> -> vector<24x32xf32>
      %174 = arith.addf %131, %173 : vector<24x32xf32>
      %175 = vector.broadcast %20 : vector<1x32xf32> to vector<24x32xf32>
      %176 = arith.addf %174, %175 : vector<24x32xf32>
      %c0_46 = arith.constant 0 : index
      %177 = arith.index_cast %arg8 : i32 to index
      %c0_47 = arith.constant 0 : index
      %c0_48 = arith.constant 0 : index
      %178 = vector.load %arg7[%c0_46, %177, %c0_47, %c0_48] : memref<1x12x24x32xf32, #tpu.memory_space<vmem>>, vector<1x1x24x32xf32>
      %179 = vector.shape_cast %178 : vector<1x1x24x32xf32> to vector<24x32xf32>
      %180 = vector.shape_cast %176 : vector<24x32xf32> to vector<1x1x24x32xf32>
      tpu.vector_store %arg7[%c0_46, %177, %c0_47, %c0_48], %180 {strides = array<i32>} : memref<1x12x24x32xf32, #tpu.memory_space<vmem>>, vector<1x1x24x32xf32>,
      scf.yield %176 : vector<24x32xf32>
    }
    %c12_i32_3 = arith.constant 12 : i32
    return
  }
  func.func @transform_0(%arg0: i32) -> (i32, i32, i32) {
    %c0_i32 = arith.constant 0 : i32
    %c0_i32_0 = arith.constant 0 : i32
    %c0_i32_1 = arith.constant 0 : i32
    return %arg0, %c0_i32, %c0_i32_0 : i32, i32, i32
  }
  func.func @transform_1(%arg0: i32) -> (i32, i32, i32) {
    %c0_i32 = arith.constant 0 : i32
    %c0_i32_0 = arith.constant 0 : i32
    %c0_i32_1 = arith.constant 0 : i32
    %c0_i32_2 = arith.constant 0 : i32
    return %c0_i32, %c0_i32_0, %c0_i32_1 : i32, i32, i32
  }
  func.func @transform_2(%arg0: i32) -> (i32, i32, i32) {
    %c0_i32 = arith.constant 0 : i32
    %c0_i32_0 = arith.constant 0 : i32
    %c0_i32_1 = arith.constant 0 : i32
    %c0_i32_2 = arith.constant 0 : i32
    return %c0_i32, %c0_i32_0, %c0_i32_1 : i32, i32, i32
  }
  func.func @transform_3(%arg0: i32) -> (i32, i32, i32) {
    %c0_i32 = arith.constant 0 : i32
    %c0_i32_0 = arith.constant 0 : i32
    %c0_i32_1 = arith.constant 0 : i32
    %c0_i32_2 = arith.constant 0 : i32
    return %c0_i32, %c0_i32_0, %c0_i32_1 : i32, i32, i32
  }
  func.func @transform_4(%arg0: i32) -> (i32, i32, i32) {
    %c0_i32 = arith.constant 0 : i32
    %c0_i32_0 = arith.constant 0 : i32
    %c0_i32_1 = arith.constant 0 : i32
    %c0_i32_2 = arith.constant 0 : i32
    return %c0_i32, %c0_i32_0, %c0_i32_1 : i32, i32, i32
  }
  func.func @transform_5(%arg0: i32) -> (i32, i32, i32) {
    %c0_i32 = arith.constant 0 : i32
    %c0_i32_0 = arith.constant 0 : i32
    %c0_i32_1 = arith.constant 0 : i32
    %c0_i32_2 = arith.constant 0 : i32
    return %c0_i32, %c0_i32_0, %c0_i32_1 : i32, i32, i32
  }
  func.func @transform_6(%arg0: i32) -> (i32, i32, i32, i32) {
    %c0_i32 = arith.constant 0 : i32
    %c0_i32_0 = arith.constant 0 : i32
    %c0_i32_1 = arith.constant 0 : i32
    %c0_i32_2 = arith.constant 0 : i32
    return %arg0, %c0_i32, %c0_i32_0, %c0_i32_1 : i32, i32, i32, i32
  }
}

</mosaic_0001>

<llo_original>
// kernel: clip_visual_encoder_forward.1
$region0: #{clip_visual_encoder_forward.1}
  #allocation0 [shape = 'u32[]', space=smem, size = 0x4, offset = 0x4, fixed_abs, tag = 'smem constant byte address 0x4 - core index']
  #allocation1 [shape = 'u32[144,128]{1,0:T(1,128)}', space=vmem, size = 0x12000, scoped, tag = 'internal scratch']
  %s0 = inlined_call_operand.vmem [shape: f32[2,24,32], index: 0, kind: input, shape index: {}]
  %s1 = inlined_call_operand.vmem [shape: bf16[12,32,96], index: 1, kind: input, shape index: {}]
  %s2 = inlined_call_operand.vmem [shape: bf16[12,32,32], index: 2, kind: input, shape index: {}]
  %s3 = inlined_call_operand.vmem [shape: bf16[12,32,128], index: 3, kind: input, shape index: {}]
  %s4 = inlined_call_operand.vmem [shape: bf16[12,128,32], index: 4, kind: input, shape index: {}]
  %s5 = inlined_call_operand.vmem [shape: f32[12,8,128], index: 5, kind: input, shape index: {}]
  %s6 = inlined_call_operand.vmem [shape: f32[2,12,24,32], index: 6, kind: output, shape index: {}]
  %s7 = sld [smem:[#allocation0]]
  $region64: #{clip_visual_encoder_forward.1} parent=0
    _
  %s9 = ssub.s32 1, %s7
  %s10 = scalar_select 0, %s9, %s7
  loop: start=0, step=1, limit=4
  $region2: #{clip_visual_encoder_forward.1} parent=0 // loop_pre_header
    _
  $region3: #{clip_visual_encoder_forward.1} parent=0 // loop_header
    %s12 = sphi 0, %s16
    %p13 = scmp.ge.s32.totalorder %s12, 4
    %s22 = sphi 0, %s24
    %s25 = sphi 0, %s22
    %s26 = sphi 0, %s25
    %s42 = sphi 0, %s26
    %s46 = sphi 0, %s46
    %s48 = sphi 0, %s46
    %s49 = sphi 0, %s48
    %s63 = sphi 0, %s49
    %s67 = sphi 0, %s67
    %s69 = sphi 0, %s67
    %s70 = sphi 0, %s69
    %s84 = sphi 0, %s70
    %s88 = sphi 0, %s88
    %s90 = sphi 0, %s88
    %s91 = sphi 0, %s90
    %s105 = sphi 0, %s91
    %s109 = sphi 0, %s109
    %s111 = sphi 0, %s109
    %s112 = sphi 0, %s111
    %s126 = sphi 0, %s112
    %s130 = sphi 0, %s130
    %s132 = sphi 0, %s130
    %s133 = sphi 0, %s132
    %s147 = sphi 0, %s133
    %s153 = sphi 0, %s155
    %s156 = sphi 0, %s153
    %s157 = sphi 0, %s156
    %s173 = sphi 0, %s157
  $region4: #{clip_visual_encoder_forward.1} parent=0 // loop_header_branch
    %15 = sbr.rel (%p13) target = $region8
  $region5: #{clip_visual_encoder_forward.1} parent=0 // loop_body
    %s17 = ssub.s32 %s12, 1
    %s18 = ssub.s32 %s12, 2
    %s19 = sadd.s32 %s12, 1
    %s20 = ssub.s32 %s12, %s19
    %p21 = scmp.eq.s32.totalorder %s20, 0
    %s23 = sadd.s32 %s22, 1
    %s24 = scalar_select %p21, %s22, %s23
    %p27 = pneg %p21
    %p28 = scmp.eq.s32.totalorder %s12, 1
    %p29 = por %p27, %p28
    %p30 = scmp.ne.s32.totalorder %s22, %s25
    %p31 = scmp.eq.s32.totalorder %s12, 0
    %p32 = por %p30, %p31
    %p33 = scmp.ne.s32.totalorder %s22, %s25
    %p34 = scmp.eq.s32.totalorder %s17, 1
    %p35 = por %p33, %p34
    %p36 = scmp.ne.s32.totalorder %s25, %s26
    %p37 = scmp.eq.s32.totalorder %s17, 0
    %p38 = por %p36, %p37
    %p39 = scmp.ne.s32.totalorder %s25, %s26
    %p40 = scmp.eq.s32.totalorder %s18, 1
    %p41 = por %p39, %p40
    %p43 = scmp.ne.s32.totalorder %s26, %s42
    %p44 = scmp.eq.s32.totalorder %s18, 0
    %p45 = por %p43, %p44
    %s47 = sadd.s32 %s46, 1
    %p50 = scmp.eq.s32.totalorder %s12, 1
    %p51 = scmp.ne.s32.totalorder %s46, %s48
    %p52 = scmp.eq.s32.totalorder %s12, 0
    %p53 = por %p51, %p52
    %p54 = scmp.ne.s32.totalorder %s46, %s48
    %p55 = scmp.eq.s32.totalorder %s17, 1
    %p56 = por %p54, %p55
    %p57 = scmp.ne.s32.totalorder %s48, %s49
    %p58 = scmp.eq.s32.totalorder %s17, 0
    %p59 = por %p57, %p58
    %p60 = scmp.ne.s32.totalorder %s48, %s49
    %p61 = scmp.eq.s32.totalorder %s18, 1
    %p62 = por %p60, %p61
    %p64 = scmp.ne.s32.totalorder %s49, %s63
    %p65 = scmp.eq.s32.totalorder %s18, 0
    %p66 = por %p64, %p65
    %s68 = sadd.s32 %s67, 1
    %p71 = scmp.eq.s32.totalorder %s12, 1
    %p72 = scmp.ne.s32.totalorder %s67, %s69
    %p73 = scmp.eq.s32.totalorder %s12, 0
    %p74 = por %p72, %p73
    %p75 = scmp.ne.s32.totalorder %s67, %s69
    %p76 = scmp.eq.s32.totalorder %s17, 1
    %p77 = por %p75, %p76
    %p78 = scmp.ne.s32.totalorder %s69, %s70
    %p79 = scmp.eq.s32.totalorder %s17, 0
    %p80 = por %p78, %p79
    %p81 = scmp.ne.s32.totalorder %s69, %s70
    %p82 = scmp.eq.s32.totalorder %s18, 1
    %p83 = por %p81, %p82
    %p85 = scmp.ne.s32.totalorder %s70, %s84
    %p86 = scmp.eq.s32.totalorder %s18, 0
    %p87 = por %p85, %p86
    %s89 = sadd.s32 %s88, 1
    %p92 = scmp.eq.s32.totalorder %s12, 1
    %p93 = scmp.ne.s32.totalorder %s88, %s90
    %p94 = scmp.eq.s32.totalorder %s12, 0
    %p95 = por %p93, %p94
    %p96 = scmp.ne.s32.totalorder %s88, %s90
    %p97 = scmp.eq.s32.totalorder %s17, 1
    %p98 = por %p96, %p97
    %p99 = scmp.ne.s32.totalorder %s90, %s91
    %p100 = scmp.eq.s32.totalorder %s17, 0
    %p101 = por %p99, %p100
    %p102 = scmp.ne.s32.totalorder %s90, %s91
    %p103 = scmp.eq.s32.totalorder %s18, 1
    %p104 = por %p102, %p103
    %p106 = scmp.ne.s32.totalorder %s91, %s105
    %p107 = scmp.eq.s32.totalorder %s18, 0
    %p108 = por %p106, %p107
    %s110 = sadd.s32 %s109, 1
    %p113 = scmp.eq.s32.totalorder %s12, 1
    %p114 = scmp.ne.s32.totalorder %s109, %s111
    %p115 = scmp.eq.s32.totalorder %s12, 0
    %p116 = por %p114, %p115
    %p117 = scmp.ne.s32.totalorder %s109, %s111
    %p118 = scmp.eq.s32.totalorder %s17, 1
    %p119 = por %p117, %p118
    %p120 = scmp.ne.s32.totalorder %s111, %s112
    %p121 = scmp.eq.s32.totalorder %s17, 0
    %p122 = por %p120, %p121
    %p123 = scmp.ne.s32.totalorder %s111, %s112
    %p124 = scmp.eq.s32.totalorder %s18, 1
    %p125 = por %p123, %p124
    %p127 = scmp.ne.s32.totalorder %s112, %s126
    %p128 = scmp.eq.s32.totalorder %s18, 0
    %p129 = por %p127, %p128
    %s131 = sadd.s32 %s130, 1
    %p134 = scmp.eq.s32.totalorder %s12, 1
    %p135 = scmp.ne.s32.totalorder %s130, %s132
    %p136 = scmp.eq.s32.totalorder %s12, 0
    %p137 = por %p135, %p136
    %p138 = scmp.ne.s32.totalorder %s130, %s132
    %p139 = scmp.eq.s32.totalorder %s17, 1
    %p140 = por %p138, %p139
    %p141 = scmp.ne.s32.totalorder %s132, %s133
    %p142 = scmp.eq.s32.totalorder %s17, 0
    %p143 = por %p141, %p142
    %p144 = scmp.ne.s32.totalorder %s132, %s133
    %p145 = scmp.eq.s32.totalorder %s18, 1
    %p146 = por %p144, %p145
    %p148 = scmp.ne.s32.totalorder %s133, %s147
    %p149 = scmp.eq.s32.totalorder %s18, 0
    %p150 = por %p148, %p149
    %s151 = ssub.s32 %s12, %s19
    %p152 = scmp.eq.s32.totalorder %s151, 0
    %s154 = sadd.s32 %s153, 1
    %s155 = scalar_select %p152, %s153, %s154
    %p158 = pneg %p152
    %p159 = scmp.eq.s32.totalorder %s12, 1
    %p160 = por %p158, %p159
    %p161 = scmp.ne.s32.totalorder %s153, %s156
    %p162 = scmp.eq.s32.totalorder %s12, 0
    %p163 = por %p161, %p162
    %p164 = scmp.ne.s32.totalorder %s153, %s156
    %p165 = scmp.eq.s32.totalorder %s17, 1
    %p166 = por %p164, %p165
    %p167 = scmp.ne.s32.totalorder %s156, %s157
    %p168 = scmp.eq.s32.totalorder %s17, 0
    %p169 = por %p167, %p168
    %p170 = scmp.ne.s32.totalorder %s156, %s157
    %p171 = scmp.eq.s32.totalorder %s18, 1
    %p172 = por %p170, %p171
    %p174 = scmp.ne.s32.totalorder %s157, %s173
    %p175 = scmp.eq.s32.totalorder %s18, 0
    %p176 = por %p174, %p175
    %p177 = scmp.le.s32.totalorder 1, %s12
    %p178 = scmp.lt.s32.totalorder %s12, 3
    %p179 = pnand %p177, %p178
    %p180 = pneg %p179
    // Predicated region
    $region9: #{clip_visual_encoder_forward.1} parent=5 // pred_check
      _
    $region10: #{clip_visual_encoder_forward.1} parent=5 // pred_check_branch
      %182 = sbr.rel (%p179) target = $region12
    $region11: #{clip_visual_encoder_forward.1} parent=5 // pred_region
      %s183 = ssub.s32 %s12, 1
      // Predicated region
      $region13: #{clip_visual_encoder_forward.1} parent=11 // pred_check
        %p184 = pneg %p59
      $region14: #{clip_visual_encoder_forward.1} parent=11 // pred_check_branch
        %186 = sbr.rel (%p184) target = $region16
      $region15: #{clip_visual_encoder_forward.1} parent=11 // pred_region
        _
      $region16: #{clip_visual_encoder_forward.1} parent=11 // pred_fallthru
        _
      // Predicated region
      $region17: #{clip_visual_encoder_forward.1} parent=11 // pred_check
        %p187 = pneg %p80
      $region18: #{clip_visual_encoder_forward.1} parent=11 // pred_check_branch
        %189 = sbr.rel (%p187) target = $region20
      $region19: #{clip_visual_encoder_forward.1} parent=11 // pred_region
        _
      $region20: #{clip_visual_encoder_forward.1} parent=11 // pred_fallthru
        _
      // Predicated region
      $region21: #{clip_visual_encoder_forward.1} parent=11 // pred_check
        %p190 = pneg %p101
      $region22: #{clip_visual_encoder_forward.1} parent=11 // pred_check_branch
        %192 = sbr.rel (%p190) target = $region24
      $region23: #{clip_visual_encoder_forward.1} parent=11 // pred_region
        _
      $region24: #{clip_visual_encoder_forward.1} parent=11 // pred_fallthru
        _
      // Predicated region
      $region25: #{clip_visual_encoder_forward.1} parent=11 // pred_check
        %p193 = pneg %p122
      $region26: #{clip_visual_encoder_forward.1} parent=11 // pred_check_branch
        %195 = sbr.rel (%p193) target = $region28
      $region27: #{clip_visual_encoder_forward.1} parent=11 // pred_region
        _
      $region28: #{clip_visual_encoder_forward.1} parent=11 // pred_fallthru
        _
      // Predicated region
      $region29: #{clip_visual_encoder_forward.1} parent=11 // pred_check
        %p196 = pneg %p143
      $region30: #{clip_visual_encoder_forward.1} parent=11 // pred_check_branch
        %198 = sbr.rel (%p196) target = $region32
      $region31: #{clip_visual_encoder_forward.1} parent=11 // pred_region
        _
      $region32: #{clip_visual_encoder_forward.1} parent=11 // pred_fallthru
        _
    $region12: #{clip_visual_encoder_forward.1} parent=5 // pred_fallthru
      _
    %p199 = scmp.lt.s32.totalorder %s12, 2
    // Predicated region
    $region33: #{clip_visual_encoder_forward.1} parent=5 // pred_check
      %p200 = pneg %p199
    $region34: #{clip_visual_encoder_forward.1} parent=5 // pred_check_branch
      %202 = sbr.rel (%p200) target = $region36
    $region35: #{clip_visual_encoder_forward.1} parent=5 // pred_region
      // Predicated region
      $region37: #{clip_visual_encoder_forward.1} parent=35 // pred_check
        %p203 = pneg %p32
      $region38: #{clip_visual_encoder_forward.1} parent=35 // pred_check_branch
        %205 = sbr.rel (%p203) target = $region40
      $region39: #{clip_visual_encoder_forward.1} parent=35 // pred_region
        %p206 = scmp.lt.s32.totalorder %s12, 1
        %s207 = scalar_select %p206, %s12, 1
        %s208 = smul.addr %s207, 3
        %s209 = smul.addr %s208, 8
        %s210 = scalar_lea.vmem %s0, %s209
      $region40: #{clip_visual_encoder_forward.1} parent=35 // pred_fallthru
        _
    $region36: #{clip_visual_encoder_forward.1} parent=5 // pred_fallthru
      _
    %p211 = scmp.le.s32.totalorder 1, %s12
    %p212 = scmp.lt.s32.totalorder %s12, 3
    %p213 = pnand %p211, %p212
    %p214 = pneg %p213
    // Predicated region
    $region41: #{clip_visual_encoder_forward.1} parent=5 // pred_check
      _
    $region42: #{clip_visual_encoder_forward.1} parent=5 // pred_check_branch
      %216 = sbr.rel (%p213) target = $region44
    $region43: #{clip_visual_encoder_forward.1} parent=5 // pred_region
      %s217 = ssub.s32 %s12, 1
      %p218 = scmp.lt.s32.totalorder %s17, 1
      %s219 = scalar_select %p218, %s17, 1
      %s220 = smul.addr %s219, 3
      %s221 = smul.addr %s220, 8
      %s222 = scalar_lea.vmem %s0, %s221
      %p223 = pneg %p38
      %p224 = pneg %p35
      %p225 = pneg %p59
      %p226 = pneg %p56
      %p227 = pneg %p80
      %p228 = pneg %p77
      %p229 = pneg %p101
      %p230 = pneg %p98
      %p231 = pneg %p122
      %p232 = pneg %p119
      %p233 = pneg %p143
      %p234 = pneg %p140
      %p235 = pneg %p169
      %p236 = pneg %p166
      %p237 = scmp.lt.s32.totalorder %s17, 1
      %s238 = scalar_select %p237, %s17, 1
      %s239 = smul.addr %s238, 36
      %s240 = smul.addr %s239, 8
      %s241 = scalar_lea.vmem %s6, %s240
      %p242 = scmp.lt.s32.totalorder %s17, 1
      %s243 = scalar_select %p242, %s17, 1
      %s244 = smul.addr %s243, 3
      %s245 = smul.addr %s244, 8
      %s246 = scalar_lea.vmem %s0, %s245
      %p247 = scmp.lt.s32.totalorder %s17, 1
      %s248 = scalar_select %p247, %s17, 1
      %s249 = smul.addr %s248, 36
      %s250 = smul.addr %s249, 8
      %s251 = scalar_lea.vmem %s6, %s250
      %v253 = vlaneseq
      %v254 = vand.u32 %v253, 127
      %vm255 = vcmp.lt.s32.totalorder %v254, 17
      %v256 = vsel %vm255, 0.0, -1e+30
      %v257 = vld [vmem:[%s246] sm:$0xff]
      %v258 = vld [vmem:[%s246 + $0x8] sm:$0xff]
      %v259 = vld [vmem:[%s246 + $0x10] sm:$0xff]
      loop: start=0, step=1, limit=12
      $region45: #{clip_visual_encoder_forward.1} parent=43 // loop_pre_header
        _
      $region46: #{clip_visual_encoder_forward.1} parent=43 // loop_header
        %s261 = sphi 0, %s265
        %p262 = scmp.ge.s32.totalorder %s261, 12
        %v266 = vphi %v257, %v1478
        %v267 = vphi %v258, %v1479
        %v268 = vphi %v259, %v1480
      $region47: #{clip_visual_encoder_forward.1} parent=43 // loop_header_branch
        %264 = sbr.rel (%p262) target = $region51
      $region48: #{clip_visual_encoder_forward.1} parent=43 // loop_body
        %s269 = smul.u32 %s261, 8
        %s270 = scalar_lea.vmem %s5, %s269
        %v271 = vld [vmem:[%s270] sm:$0xff]
        %vm272 = vcmask 261120
        %v273 = vsel %vm272, %v266, 0.0
        %274 = vadd.xlane.f32.xlu0 %v273
        %v275 = vpop.xlane.xlu0 %274
        %v276 = vsel %vm272, %v267, 0.0
        %277 = vadd.xlane.f32.xlu0 %v276
        %v278 = vpop.xlane.xlu0 %277
        %v279 = vsel %vm272, %v268, 0.0
        %280 = vadd.xlane.f32.xlu0 %v279
        %v281 = vpop.xlane.xlu0 %280
        %v282 = vrcp.pop 32.0
        %v283 = vmul.f32 %v275, %v282
        %v284 = vmul.f32 %v278, %v282
        %v285 = vmul.f32 %v281, %v282
        %v286 = vsub.f32 %v266, %v283
        %v287 = vsub.f32 %v267, %v284
        %v288 = vsub.f32 %v268, %v285
        %v289 = vmul.f32 %v286, %v286
        %v290 = vmul.f32 %v287, %v287
        %v291 = vmul.f32 %v288, %v288
        %v292 = vsel %vm272, %v289, 0.0
        %293 = vadd.xlane.f32.xlu0 %v292
        %v294 = vpop.xlane.xlu0 %293
        %v295 = vsel %vm272, %v290, 0.0
        %296 = vadd.xlane.f32.xlu0 %v295
        %v297 = vpop.xlane.xlu0 %296
        %v298 = vsel %vm272, %v291, 0.0
        %299 = vadd.xlane.f32.xlu0 %v298
        %v300 = vpop.xlane.xlu0 %299
        %v301 = vmul.f32 %v294, %v282
        %v302 = vmul.f32 %v297, %v282
        %v303 = vmul.f32 %v300, %v282
        %v304 = vadd.f32 %v301, 1e-05
        %v305 = vadd.f32 %v302, 1e-05
        %v306 = vadd.f32 %v303, 1e-05
        %v307 = vrsqrt.pop %v304
        %v308 = vrsqrt.pop %v305
        %v309 = vrsqrt.pop %v306
        %v310 = vmul.f32 %v286, %v307
        %v311 = vmul.f32 %v287, %v308
        %v312 = vmul.f32 %v288, %v309
        %v313 = vlaneseq
        %v314 = vshrl.u32 %v313, 7
        %v315 = vsub.s32 0, %v314
        %v316 = vrot.slane %v271, %v315
        %v317 = vmul.f32 %v310, %v316
        %v318 = vmul.f32 %v311, %v316
        %v319 = vmul.f32 %v312, %v316
        %v320 = vlaneseq
        %v321 = vshrl.u32 %v320, 7
        %v322 = vsub.s32 1, %v321
        %v323 = vrot.slane %v271, %v322
        %v324 = vadd.f32 %v317, %v323
        %v325 = vadd.f32 %v318, %v323
        %v326 = vadd.f32 %v319, %v323
        %v327 = vpack.c.bf16 %v325, %v324
        %v328 = vpack.c.bf16 %v326, %v326
        %s329 = smul.u32 %s261, 4
        %s330 = smul.addr %s329, 4
        %s331 = scalar_lea.vmem %s1, %s330
        %v332 = vld [vmem:[%s331] sm:$0xf]
        %v333 = vld [vmem:[%s331 + $0x4] sm:$0xf]
        %v334 = vld [vmem:[%s331 + $0x8] sm:$0xf]
        %v335 = vld [vmem:[%s331 + $0xc] sm:$0xf]
        %v336 = vlaneseq
        %v337 = vshrl.u32 %v336, 7
        %v338 = vsub.s32 2, %v337
        %v339 = vrot.slane %v271, %v338
        %v344 = vunpack.c.l.b16 %v332
        %v345 = vunpack.c.l.b16 %v333
        %v346 = vunpack.c.l.b16 %v334
        %v347 = vunpack.c.l.b16 %v335
        %v348 = vpack.c.b16 %v345, %v344
        %v349 = vpack.c.b16 %v347, %v346
        %v353 = vsel %vm272, %v327, 0
        %v356 = vsel %vm272, %v328, 0
        %358 = vmatprep.subr.bf16.mxu0 0
        %359 = vmatpush1.bf16.msra.mxu0 %v348
        %360 = vmatprep.subr.bf16.mxu0 0
        %361 = vmatpush1.bf16.msra.mxu0 %v349
        %362 = vmatprep.subr.bf16.mxu0 0
        %363 = vmatpush1.bf16.msra.mxu0 0
        %364 = vmatprep.subr.bf16.mxu0 0
        %365 = vmatpush1.bf16.msra.mxu0 0
        %366 = vmatprep.subr.bf16.mxu0 0
        %367 = vmatpush1.bf16.msra.mxu0 0
        %368 = vmatprep.subr.bf16.mxu0 0
        %369 = vmatpush1.bf16.msra.mxu0 0
        %370 = vmatprep.subr.bf16.mxu0 0
        %371 = vmatpush1.bf16.msra.mxu0 0
        %372 = vmatprep.subr.bf16.mxu0 0
        %373 = vmatpush1.bf16.msra.mxu0 0
        %374 = vmatprep.subr.bf16.mxu0 0
        %375 = vmatpush1.bf16.msra.mxu0 0
        %376 = vmatprep.subr.bf16.mxu0 0
        %377 = vmatpush1.bf16.msra.mxu0 0
        %378 = vmatprep.subr.bf16.mxu0 0
        %379 = vmatpush1.bf16.msra.mxu0 0
        %380 = vmatprep.subr.bf16.mxu0 0
        %381 = vmatpush1.bf16.msra.mxu0 0
        %382 = vmatprep.subr.bf16.mxu0 0
        %383 = vmatpush1.bf16.msra.mxu0 0
        %384 = vmatprep.subr.bf16.mxu0 0
        %385 = vmatpush1.bf16.msra.mxu0 0
        %386 = vmatprep.subr.bf16.mxu0 0
        %387 = vmatpush1.bf16.msra.mxu0 0
        %388 = vmatprep.subr.bf16.mxu0 0
        %389 = vmatpush1.bf16.msra.mxu0 0
        %390 = vmatprep.mubr.bf16.mxu0 0
        %391 = vmatmul.mubr.bf16.gmra.mrb[0].mxu0 %v353
        %v392 = vpop.f32.mrb[0].mxu0
        %v393 = vadd.f32 %v339, %v392
        %v394 = vpop.f32.mrb[0].mxu0
        %v395 = vpop.f32.mrb[0].mxu0
        %v396 = vadd.f32 %v339, %v395
        %v397 = vpop.f32.mrb[0].mxu0
        %398 = vmatprep.mubr.bf16.mxu0 0
        %399 = vmatmul.mubr.bf16.gmra.mrb[0].mxu0 %v356
        %v400 = vpop.f32.mrb[0].mxu0
        %v401 = vadd.f32 %v339, %v400
        %v402 = vpop.f32.mrb[0].mxu0
        %v403 = vpop.f32.mrb[0].mxu0
        %v404 = vpop.f32.mrb[0].mxu0
        %405 = vdwg.mxu0
        %v406 = vpack.c.bf16 %v396, %v393
        %v407 = vpack.c.bf16 %v401, %v401
        %410 = vrot.lane.b32.xlu0 %v406, 96
        %v411 = vpop.permute.xlu0 %410
        %412 = vrot.lane.b32.xlu0 %v407, 96
        %v413 = vpop.permute.xlu0 %412
        %vm414 = vcmask 64512
        %v416 = vsel %vm414, %v406, 0
        %v419 = vsel %vm414, %v407, 0
        %v422 = vsel %vm414, %v411, 0
        %v425 = vsel %vm414, %v413, 0
        %427 = vmatprep.subr.bf16.mxu0 0
        %428 = vmatpush1.bf16.xpose.msra.mxu0 %v422
        %429 = vmatprep.subr.bf16.mxu0 0
        %430 = vmatpush1.bf16.xpose.msra.mxu0 %v425
        %431 = vmatprep.subr.bf16.mxu0 0
        %432 = vmatpush1.bf16.xpose.msra.mxu0 0
        %433 = vmatprep.subr.bf16.mxu0 0
        %434 = vmatpush1.bf16.xpose.msra.mxu0 0
        %435 = vmatprep.subr.bf16.mxu0 0
        %436 = vmatpush1.bf16.xpose.msra.mxu0 0
        %437 = vmatprep.subr.bf16.mxu0 0
        %438 = vmatpush1.bf16.xpose.msra.mxu0 0
        %439 = vmatprep.subr.bf16.mxu0 0
        %440 = vmatpush1.bf16.xpose.msra.mxu0 0
        %441 = vmatprep.subr.bf16.mxu0 0
        %442 = vmatpush1.bf16.xpose.msra.mxu0 0
        %443 = vmatprep.subr.bf16.mxu0 0
        %444 = vmatpush1.bf16.xpose.msra.mxu0 0
        %445 = vmatprep.subr.bf16.mxu0 0
        %446 = vmatpush1.bf16.xpose.msra.mxu0 0
        %447 = vmatprep.subr.bf16.mxu0 0
        %448 = vmatpush1.bf16.xpose.msra.mxu0 0
        %449 = vmatprep.subr.bf16.mxu0 0
        %450 = vmatpush1.bf16.xpose.msra.mxu0 0
        %451 = vmatprep.subr.bf16.mxu0 0
        %452 = vmatpush1.bf16.xpose.msra.mxu0 0
        %453 = vmatprep.subr.bf16.mxu0 0
        %454 = vmatpush1.bf16.xpose.msra.mxu0 0
        %455 = vmatprep.subr.bf16.mxu0 0
        %456 = vmatpush1.bf16.xpose.msra.mxu0 0
        %457 = vmatprep.subr.bf16.mxu0 0
        %458 = vmatpush1.bf16.xpose.msra.mxu0 0
        %459 = vmatprep.mubr.bf16.mxu0 0
        %460 = vmatmul.mubr.bf16.gmra.mrb[0].mxu0 %v416
        %v461 = vpop.f32.mrb[0].mxu0
        %v462 = vadd.f32 %v256, %v461
        %v463 = vpop.f32.mrb[0].mxu0
        %v464 = vpop.f32.mrb[0].mxu0
        %v465 = vadd.f32 %v256, %v464
        %v466 = vpop.f32.mrb[0].mxu0
        %467 = vmatprep.mubr.bf16.mxu0 0
        %468 = vmatmul.mubr.bf16.gmra.mrb[0].mxu0 %v419
        %v469 = vpop.f32.mrb[0].mxu0
        %v470 = vadd.f32 %v256, %v469
        %v471 = vpop.f32.mrb[0].mxu0
        %v472 = vpop.f32.mrb[0].mxu0
        %v473 = vpop.f32.mrb[0].mxu0
        %474 = vdwg.mxu0
        %vm475 = vcmask 195584
        %v476 = vsel %vm475, %v462, -inf
        %477 = vmax.xlane.f32.xlu0 %v476
        %v478 = vpop.xlane.xlu0 %477
        %v479 = vsel %vm475, %v465, -inf
        %480 = vmax.xlane.f32.xlu0 %v479
        %v481 = vpop.xlane.xlu0 %480
        %v482 = vsel %vm475, %v470, -inf
        %483 = vmax.xlane.f32.xlu0 %v482
        %v484 = vpop.xlane.xlu0 %483
        %v485 = vsub.f32 %v462, %v478
        %v486 = vsub.f32 %v465, %v481
        %v487 = vsub.f32 %v470, %v484
        %v488 = vmul.f32 %v485, 1.442695
        %v489 = vpow.pop %v488
        %v490 = vmul.f32 %v486, 1.442695
        %v491 = vpow.pop %v490
        %v492 = vmul.f32 %v487, 1.442695
        %v493 = vpow.pop %v492
        %v494 = vsel %vm475, %v489, 0.0
        %495 = vadd.xlane.f32.xlu0 %v494
        %v496 = vpop.xlane.xlu0 %495
        %v497 = vsel %vm475, %v491, 0.0
        %498 = vadd.xlane.f32.xlu0 %v497
        %v499 = vpop.xlane.xlu0 %498
        %v500 = vsel %vm475, %v493, 0.0
        %501 = vadd.xlane.f32.xlu0 %v500
        %v502 = vpop.xlane.xlu0 %501
        %v503 = vrcp.pop %v496
        %v504 = vrcp.pop %v499
        %v505 = vrcp.pop %v502
        %v506 = vmul.f32 %v489, %v503
        %v507 = vmul.f32 %v491, %v504
        %v508 = vmul.f32 %v493, %v505
        %v509 = vpack.c.bf16 %v507, %v506
        %v510 = vpack.c.bf16 %v508, %v508
        %511 = vrot.lane.b32.xlu0 %v406, 64
        %v512 = vpop.permute.xlu0 %511
        %513 = vrot.lane.b32.xlu0 %v407, 64
        %v514 = vpop.permute.xlu0 %513
        %v517 = vsel %vm475, %v509, 0
        %v520 = vsel %vm475, %v510, 0
        %vm522 = vcmask 1043456
        %v524 = vsel %vm522, %v514, 0
        %526 = vmatprep.subr.bf16.mxu0 0
        %527 = vmatpush1.bf16.msra.mxu0 %v512
        %528 = vmatprep.subr.bf16.mxu0 0
        %529 = vmatpush1.bf16.msra.mxu0 %v524
        %530 = vmatprep.subr.bf16.mxu0 0
        %531 = vmatpush1.bf16.msra.mxu0 0
        %532 = vmatprep.subr.bf16.mxu0 0
        %533 = vmatpush1.bf16.msra.mxu0 0
        %534 = vmatprep.subr.bf16.mxu0 0
        %535 = vmatpush1.bf16.msra.mxu0 0
        %536 = vmatprep.subr.bf16.mxu0 0
        %537 = vmatpush1.bf16.msra.mxu0 0
        %538 = vmatprep.subr.bf16.mxu0 0
        %539 = vmatpush1.bf16.msra.mxu0 0
        %540 = vmatprep.subr.bf16.mxu0 0
        %541 = vmatpush1.bf16.msra.mxu0 0
        %542 = vmatprep.subr.bf16.mxu0 0
        %543 = vmatpush1.bf16.msra.mxu0 0
        %544 = vmatprep.subr.bf16.mxu0 0
        %545 = vmatpush1.bf16.msra.mxu0 0
        %546 = vmatprep.subr.bf16.mxu0 0
        %547 = vmatpush1.bf16.msra.mxu0 0
        %548 = vmatprep.subr.bf16.mxu0 0
        %549 = vmatpush1.bf16.msra.mxu0 0
        %550 = vmatprep.subr.bf16.mxu0 0
        %551 = vmatpush1.bf16.msra.mxu0 0
        %552 = vmatprep.subr.bf16.mxu0 0
        %553 = vmatpush1.bf16.msra.mxu0 0
        %554 = vmatprep.subr.bf16.mxu0 0
        %555 = vmatpush1.bf16.msra.mxu0 0
        %556 = vmatprep.subr.bf16.mxu0 0
        %557 = vmatpush1.bf16.msra.mxu0 0
        %558 = vmatprep.mubr.bf16.mxu0 0
        %559 = vmatmul.mubr.bf16.gmra.mrb[0].mxu0 %v517
        %v560 = vpop.f32.mrb[0].mxu0
        %v561 = vadd.f32 0.0, %v560
        %v562 = vpop.f32.mrb[0].mxu0
        %v563 = vpop.f32.mrb[0].mxu0
        %v564 = vadd.f32 0.0, %v563
        %v565 = vpop.f32.mrb[0].mxu0
        %566 = vmatprep.mubr.bf16.mxu0 0
        %567 = vmatmul.mubr.bf16.gmra.mrb[0].mxu0 %v520
        %v568 = vpop.f32.mrb[0].mxu0
        %v569 = vadd.f32 0.0, %v568
        %v570 = vpop.f32.mrb[0].mxu0
        %v571 = vpop.f32.mrb[0].mxu0
        %v572 = vpop.f32.mrb[0].mxu0
        %573 = vdwg.mxu0
        %574 = vrot.lane.b32.xlu0 %v406, 120
        %v575 = vpop.permute.xlu0 %574
        %576 = vrot.lane.b32.xlu0 %v407, 120
        %v577 = vpop.permute.xlu0 %576
        %578 = vrot.lane.b32.xlu0 %v406, 88
        %v579 = vpop.permute.xlu0 %578
        %580 = vrot.lane.b32.xlu0 %v407, 88
        %v581 = vpop.permute.xlu0 %580
        %v583 = vsel %vm414, %v575, 0
        %v586 = vsel %vm414, %v577, 0
        %v589 = vsel %vm414, %v579, 0
        %v592 = vsel %vm414, %v581, 0
        %594 = vmatprep.subr.bf16.mxu0 0
        %595 = vmatpush1.bf16.xpose.msra.mxu0 %v589
        %596 = vmatprep.subr.bf16.mxu0 0
        %597 = vmatpush1.bf16.xpose.msra.mxu0 %v592
        %598 = vmatprep.subr.bf16.mxu0 0
        %599 = vmatpush1.bf16.xpose.msra.mxu0 0
        %600 = vmatprep.subr.bf16.mxu0 0
        %601 = vmatpush1.bf16.xpose.msra.mxu0 0
        %602 = vmatprep.subr.bf16.mxu0 0
        %603 = vmatpush1.bf16.xpose.msra.mxu0 0
        %604 = vmatprep.subr.bf16.mxu0 0
        %605 = vmatpush1.bf16.xpose.msra.mxu0 0
        %606 = vmatprep.subr.bf16.mxu0 0
        %607 = vmatpush1.bf16.xpose.msra.mxu0 0
        %608 = vmatprep.subr.bf16.mxu0 0
        %609 = vmatpush1.bf16.xpose.msra.mxu0 0
        %610 = vmatprep.subr.bf16.mxu0 0
        %611 = vmatpush1.bf16.xpose.msra.mxu0 0
        %612 = vmatprep.subr.bf16.mxu0 0
        %613 = vmatpush1.bf16.xpose.msra.mxu0 0
        %614 = vmatprep.subr.bf16.mxu0 0
        %615 = vmatpush1.bf16.xpose.msra.mxu0 0
        %616 = vmatprep.subr.bf16.mxu0 0
        %617 = vmatpush1.bf16.xpose.msra.mxu0 0
        %618 = vmatprep.subr.bf16.mxu0 0
        %619 = vmatpush1.bf16.xpose.msra.mxu0 0
        %620 = vmatprep.subr.bf16.mxu0 0
        %621 = vmatpush1.bf16.xpose.msra.mxu0 0
        %622 = vmatprep.subr.bf16.mxu0 0
        %623 = vmatpush1.bf16.xpose.msra.mxu0 0
        %624 = vmatprep.subr.bf16.mxu0 0
        %625 = vmatpush1.bf16.xpose.msra.mxu0 0
        %626 = vmatprep.mubr.bf16.mxu0 0
        %627 = vmatmul.mubr.bf16.gmra.mrb[0].mxu0 %v583
        %v628 = vpop.f32.mrb[0].mxu0
        %v629 = vadd.f32 %v256, %v628
        %v630 = vpop.f32.mrb[0].mxu0
        %v631 = vpop.f32.mrb[0].mxu0
        %v632 = vadd.f32 %v256, %v631
        %v633 = vpop.f32.mrb[0].mxu0
        %634 = vmatprep.mubr.bf16.mxu0 0
        %635 = vmatmul.mubr.bf16.gmra.mrb[0].mxu0 %v586
        %v636 = vpop.f32.mrb[0].mxu0
        %v637 = vadd.f32 %v256, %v636
        %v638 = vpop.f32.mrb[0].mxu0
        %v639 = vpop.f32.mrb[0].mxu0
        %v640 = vpop.f32.mrb[0].mxu0
        %641 = vdwg.mxu0
        %v642 = vsel %vm475, %v629, -inf
        %643 = vmax.xlane.f32.xlu0 %v642
        %v644 = vpop.xlane.xlu0 %643
        %v645 = vsel %vm475, %v632, -inf
        %646 = vmax.xlane.f32.xlu0 %v645
        %v647 = vpop.xlane.xlu0 %646
        %v648 = vsel %vm475, %v637, -inf
        %649 = vmax.xlane.f32.xlu0 %v648
        %v650 = vpop.xlane.xlu0 %649
        %v651 = vsub.f32 %v629, %v644
        %v652 = vsub.f32 %v632, %v647
        %v653 = vsub.f32 %v637, %v650
        %v654 = vmul.f32 %v651, 1.442695
        %v655 = vpow.pop %v654
        %v656 = vmul.f32 %v652, 1.442695
        %v657 = vpow.pop %v656
        %v658 = vmul.f32 %v653, 1.442695
        %v659 = vpow.pop %v658
        %v660 = vsel %vm475, %v655, 0.0
        %661 = vadd.xlane.f32.xlu0 %v660
        %v662 = vpop.xlane.xlu0 %661
        %v663 = vsel %vm475, %v657, 0.0
        %664 = vadd.xlane.f32.xlu0 %v663
        %v665 = vpop.xlane.xlu0 %664
        %v666 = vsel %vm475, %v659, 0.0
        %667 = vadd.xlane.f32.xlu0 %v666
        %v668 = vpop.xlane.xlu0 %667
        %v669 = vrcp.pop %v662
        %v670 = vrcp.pop %v665
        %v671 = vrcp.pop %v668
        %v672 = vmul.f32 %v655, %v669
        %v673 = vmul.f32 %v657, %v670
        %v674 = vmul.f32 %v659, %v671
        %v675 = vpack.c.bf16 %v673, %v672
        %v676 = vpack.c.bf16 %v674, %v674
        %677 = vrot.lane.b32.xlu0 %v406, 56
        %v678 = vpop.permute.xlu0 %677
        %679 = vrot.lane.b32.xlu0 %v407, 56
        %v680 = vpop.permute.xlu0 %679
        %v683 = vsel %vm475, %v675, 0
        %v686 = vsel %vm475, %v676, 0
        %v689 = vsel %vm522, %v680, 0
        %691 = vmatprep.subr.bf16.mxu0 0
        %692 = vmatpush1.bf16.msra.mxu0 %v678
        %693 = vmatprep.subr.bf16.mxu0 0
        %694 = vmatpush1.bf16.msra.mxu0 %v689
        %695 = vmatprep.subr.bf16.mxu0 0
        %696 = vmatpush1.bf16.msra.mxu0 0
        %697 = vmatprep.subr.bf16.mxu0 0
        %698 = vmatpush1.bf16.msra.mxu0 0
        %699 = vmatprep.subr.bf16.mxu0 0
        %700 = vmatpush1.bf16.msra.mxu0 0
        %701 = vmatprep.subr.bf16.mxu0 0
        %702 = vmatpush1.bf16.msra.mxu0 0
        %703 = vmatprep.subr.bf16.mxu0 0
        %704 = vmatpush1.bf16.msra.mxu0 0
        %705 = vmatprep.subr.bf16.mxu0 0
        %706 = vmatpush1.bf16.msra.mxu0 0
        %707 = vmatprep.subr.bf16.mxu0 0
        %708 = vmatpush1.bf16.msra.mxu0 0
        %709 = vmatprep.subr.bf16.mxu0 0
        %710 = vmatpush1.bf16.msra.mxu0 0
        %711 = vmatprep.subr.bf16.mxu0 0
        %712 = vmatpush1.bf16.msra.mxu0 0
        %713 = vmatprep.subr.bf16.mxu0 0
        %714 = vmatpush1.bf16.msra.mxu0 0
        %715 = vmatprep.subr.bf16.mxu0 0
        %716 = vmatpush1.bf16.msra.mxu0 0
        %717 = vmatprep.subr.bf16.mxu0 0
        %718 = vmatpush1.bf16.msra.mxu0 0
        %719 = vmatprep.subr.bf16.mxu0 0
        %720 = vmatpush1.bf16.msra.mxu0 0
        %721 = vmatprep.subr.bf16.mxu0 0
        %722 = vmatpush1.bf16.msra.mxu0 0
        %723 = vmatprep.mubr.bf16.mxu0 0
        %724 = vmatmul.mubr.bf16.gmra.mrb[0].mxu0 %v683
        %v725 = vpop.f32.mrb[0].mxu0
        %v726 = vadd.f32 0.0, %v725
        %v727 = vpop.f32.mrb[0].mxu0
        %v728 = vpop.f32.mrb[0].mxu0
        %v729 = vadd.f32 0.0, %v728
        %v730 = vpop.f32.mrb[0].mxu0
        %731 = vmatprep.mubr.bf16.mxu0 0
        %732 = vmatmul.mubr.bf16.gmra.mrb[0].mxu0 %v686
        %v733 = vpop.f32.mrb[0].mxu0
        %v734 = vadd.f32 0.0, %v733
        %v735 = vpop.f32.mrb[0].mxu0
        %v736 = vpop.f32.mrb[0].mxu0
        %v737 = vpop.f32.mrb[0].mxu0
        %738 = vdwg.mxu0
        %739 = vrot.lane.b32.xlu0 %v406, 112
        %v740 = vpop.permute.xlu0 %739
        %741 = vrot.lane.b32.xlu0 %v407, 112
        %v742 = vpop.permute.xlu0 %741
        %743 = vrot.lane.b32.xlu0 %v406, 80
        %v744 = vpop.permute.xlu0 %743
        %745 = vrot.lane.b32.xlu0 %v407, 80
        %v746 = vpop.permute.xlu0 %745
        %v748 = vsel %vm414, %v740, 0
        %v751 = vsel %vm414, %v742, 0
        %v754 = vsel %vm414, %v744, 0
        %v757 = vsel %vm414, %v746, 0
        %759 = vmatprep.subr.bf16.mxu0 0
        %760 = vmatpush1.bf16.xpose.msra.mxu0 %v754
        %761 = vmatprep.subr.bf16.mxu0 0
        %762 = vmatpush1.bf16.xpose.msra.mxu0 %v757
        %763 = vmatprep.subr.bf16.mxu0 0
        %764 = vmatpush1.bf16.xpose.msra.mxu0 0
        %765 = vmatprep.subr.bf16.mxu0 0
        %766 = vmatpush1.bf16.xpose.msra.mxu0 0
        %767 = vmatprep.subr.bf16.mxu0 0
        %768 = vmatpush1.bf16.xpose.msra.mxu0 0
        %769 = vmatprep.subr.bf16.mxu0 0
        %770 = vmatpush1.bf16.xpose.msra.mxu0 0
        %771 = vmatprep.subr.bf16.mxu0 0
        %772 = vmatpush1.bf16.xpose.msra.mxu0 0
        %773 = vmatprep.subr.bf16.mxu0 0
        %774 = vmatpush1.bf16.xpose.msra.mxu0 0
        %775 = vmatprep.subr.bf16.mxu0 0
        %776 = vmatpush1.bf16.xpose.msra.mxu0 0
        %777 = vmatprep.subr.bf16.mxu0 0
        %778 = vmatpush1.bf16.xpose.msra.mxu0 0
        %779 = vmatprep.subr.bf16.mxu0 0
        %780 = vmatpush1.bf16.xpose.msra.mxu0 0
        %781 = vmatprep.subr.bf16.mxu0 0
        %782 = vmatpush1.bf16.xpose.msra.mxu0 0
        %783 = vmatprep.subr.bf16.mxu0 0
        %784 = vmatpush1.bf16.xpose.msra.mxu0 0
        %785 = vmatprep.subr.bf16.mxu0 0
        %786 = vmatpush1.bf16.xpose.msra.mxu0 0
        %787 = vmatprep.subr.bf16.mxu0 0
        %788 = vmatpush1.bf16.xpose.msra.mxu0 0
        %789 = vmatprep.subr.bf16.mxu0 0
        %790 = vmatpush1.bf16.xpose.msra.mxu0 0
        %791 = vmatprep.mubr.bf16.mxu0 0
        %792 = vmatmul.mubr.bf16.gmra.mrb[0].mxu0 %v748
        %v793 = vpop.f32.mrb[0].mxu0
        %v794 = vadd.f32 %v256, %v793
        %v795 = vpop.f32.mrb[0].mxu0
        %v796 = vpop.f32.mrb[0].mxu0
        %v797 = vadd.f32 %v256, %v796
        %v798 = vpop.f32.mrb[0].mxu0
        %799 = vmatprep.mubr.bf16.mxu0 0
        %800 = vmatmul.mubr.bf16.gmra.mrb[0].mxu0 %v751
        %v801 = vpop.f32.mrb[0].mxu0
        %v802 = vadd.f32 %v256, %v801
        %v803 = vpop.f32.mrb[0].mxu0
        %v804 = vpop.f32.mrb[0].mxu0
        %v805 = vpop.f32.mrb[0].mxu0
        %806 = vdwg.mxu0
        %v807 = vsel %vm475, %v794, -inf
        %808 = vmax.xlane.f32.xlu0 %v807
        %v809 = vpop.xlane.xlu0 %808
        %v810 = vsel %vm475, %v797, -inf
        %811 = vmax.xlane.f32.xlu0 %v810
        %v812 = vpop.xlane.xlu0 %811
        %v813 = vsel %vm475, %v802, -inf
        %814 = vmax.xlane.f32.xlu0 %v813
        %v815 = vpop.xlane.xlu0 %814
        %v816 = vsub.f32 %v794, %v809
        %v817 = vsub.f32 %v797, %v812
        %v818 = vsub.f32 %v802, %v815
        %v819 = vmul.f32 %v816, 1.442695
        %v820 = vpow.pop %v819
        %v821 = vmul.f32 %v817, 1.442695
        %v822 = vpow.pop %v821
        %v823 = vmul.f32 %v818, 1.442695
        %v824 = vpow.pop %v823
        %v825 = vsel %vm475, %v820, 0.0
        %826 = vadd.xlane.f32.xlu0 %v825
        %v827 = vpop.xlane.xlu0 %826
        %v828 = vsel %vm475, %v822, 0.0
        %829 = vadd.xlane.f32.xlu0 %v828
        %v830 = vpop.xlane.xlu0 %829
        %v831 = vsel %vm475, %v824, 0.0
        %832 = vadd.xlane.f32.xlu0 %v831
        %v833 = vpop.xlane.xlu0 %832
        %v834 = vrcp.pop %v827
        %v835 = vrcp.pop %v830
        %v836 = vrcp.pop %v833
        %v837 = vmul.f32 %v820, %v834
        %v838 = vmul.f32 %v822, %v835
        %v839 = vmul.f32 %v824, %v836
        %v840 = vpack.c.bf16 %v838, %v837
        %v841 = vpack.c.bf16 %v839, %v839
        %842 = vrot.lane.b32.xlu0 %v406, 48
        %v843 = vpop.permute.xlu0 %842
        %844 = vrot.lane.b32.xlu0 %v407, 48
        %v845 = vpop.permute.xlu0 %844
        %v848 = vsel %vm475, %v840, 0
        %v851 = vsel %vm475, %v841, 0
        %v854 = vsel %vm522, %v845, 0
        %856 = vmatprep.subr.bf16.mxu0 0
        %857 = vmatpush1.bf16.msra.mxu0 %v843
        %858 = vmatprep.subr.bf16.mxu0 0
        %859 = vmatpush1.bf16.msra.mxu0 %v854
        %860 = vmatprep.subr.bf16.mxu0 0
        %861 = vmatpush1.bf16.msra.mxu0 0
        %862 = vmatprep.subr.bf16.mxu0 0
        %863 = vmatpush1.bf16.msra.mxu0 0
        %864 = vmatprep.subr.bf16.mxu0 0
        %865 = vmatpush1.bf16.msra.mxu0 0
        %866 = vmatprep.subr.bf16.mxu0 0
        %867 = vmatpush1.bf16.msra.mxu0 0
        %868 = vmatprep.subr.bf16.mxu0 0
        %869 = vmatpush1.bf16.msra.mxu0 0
        %870 = vmatprep.subr.bf16.mxu0 0
        %871 = vmatpush1.bf16.msra.mxu0 0
        %872 = vmatprep.subr.bf16.mxu0 0
        %873 = vmatpush1.bf16.msra.mxu0 0
        %874 = vmatprep.subr.bf16.mxu0 0
        %875 = vmatpush1.bf16.msra.mxu0 0
        %876 = vmatprep.subr.bf16.mxu0 0
        %877 = vmatpush1.bf16.msra.mxu0 0
        %878 = vmatprep.subr.bf16.mxu0 0
        %879 = vmatpush1.bf16.msra.mxu0 0
        %880 = vmatprep.subr.bf16.mxu0 0
        %881 = vmatpush1.bf16.msra.mxu0 0
        %882 = vmatprep.subr.bf16.mxu0 0
        %883 = vmatpush1.bf16.msra.mxu0 0
        %884 = vmatprep.subr.bf16.mxu0 0
        %885 = vmatpush1.bf16.msra.mxu0 0
        %886 = vmatprep.subr.bf16.mxu0 0
        %887 = vmatpush1.bf16.msra.mxu0 0
        %888 = vmatprep.mubr.bf16.mxu0 0
        %889 = vmatmul.mubr.bf16.gmra.mrb[0].mxu0 %v848
        %v890 = vpop.f32.mrb[0].mxu0
        %v891 = vadd.f32 0.0, %v890
        %v892 = vpop.f32.mrb[0].mxu0
        %v893 = vpop.f32.mrb[0].mxu0
        %v894 = vadd.f32 0.0, %v893
        %v895 = vpop.f32.mrb[0].mxu0
        %896 = vmatprep.mubr.bf16.mxu0 0
        %897 = vmatmul.mubr.bf16.gmra.mrb[0].mxu0 %v851
        %v898 = vpop.f32.mrb[0].mxu0
        %v899 = vadd.f32 0.0, %v898
        %v900 = vpop.f32.mrb[0].mxu0
        %v901 = vpop.f32.mrb[0].mxu0
        %v902 = vpop.f32.mrb[0].mxu0
        %903 = vdwg.mxu0
        %904 = vrot.lane.b32.xlu0 %v406, 104
        %v905 = vpop.permute.xlu0 %904
        %906 = vrot.lane.b32.xlu0 %v407, 104
        %v907 = vpop.permute.xlu0 %906
        %908 = vrot.lane.b32.xlu0 %v406, 72
        %v909 = vpop.permute.xlu0 %908
        %910 = vrot.lane.b32.xlu0 %v407, 72
        %v911 = vpop.permute.xlu0 %910
        %v913 = vsel %vm414, %v905, 0
        %v916 = vsel %vm414, %v907, 0
        %v919 = vsel %vm414, %v909, 0
        %v922 = vsel %vm414, %v911, 0
        %924 = vmatprep.subr.bf16.mxu0 0
        %925 = vmatpush1.bf16.xpose.msra.mxu0 %v919
        %926 = vmatprep.subr.bf16.mxu0 0
        %927 = vmatpush1.bf16.xpose.msra.mxu0 %v922
        %928 = vmatprep.subr.bf16.mxu0 0
        %929 = vmatpush1.bf16.xpose.msra.mxu0 0
        %930 = vmatprep.subr.bf16.mxu0 0
        %931 = vmatpush1.bf16.xpose.msra.mxu0 0
        %932 = vmatprep.subr.bf16.mxu0 0
        %933 = vmatpush1.bf16.xpose.msra.mxu0 0
        %934 = vmatprep.subr.bf16.mxu0 0
        %935 = vmatpush1.bf16.xpose.msra.mxu0 0
        %936 = vmatprep.subr.bf16.mxu0 0
        %937 = vmatpush1.bf16.xpose.msra.mxu0 0
        %938 = vmatprep.subr.bf16.mxu0 0
        %939 = vmatpush1.bf16.xpose.msra.mxu0 0
        %940 = vmatprep.subr.bf16.mxu0 0
        %941 = vmatpush1.bf16.xpose.msra.mxu0 0
        %942 = vmatprep.subr.bf16.mxu0 0
        %943 = vmatpush1.bf16.xpose.msra.mxu0 0
        %944 = vmatprep.subr.bf16.mxu0 0
        %945 = vmatpush1.bf16.xpose.msra.mxu0 0
        %946 = vmatprep.subr.bf16.mxu0 0
        %947 = vmatpush1.bf16.xpose.msra.mxu0 0
        %948 = vmatprep.subr.bf16.mxu0 0
        %949 = vmatpush1.bf16.xpose.msra.mxu0 0
        %950 = vmatprep.subr.bf16.mxu0 0
        %951 = vmatpush1.bf16.xpose.msra.mxu0 0
        %952 = vmatprep.subr.bf16.mxu0 0
        %953 = vmatpush1.bf16.xpose.msra.mxu0 0
        %954 = vmatprep.subr.bf16.mxu0 0
        %955 = vmatpush1.bf16.xpose.msra.mxu0 0
        %956 = vmatprep.mubr.bf16.mxu0 0
        %957 = vmatmul.mubr.bf16.gmra.mrb[0].mxu0 %v913
        %v958 = vpop.f32.mrb[0].mxu0
        %v959 = vadd.f32 %v256, %v958
        %v960 = vpop.f32.mrb[0].mxu0
        %v961 = vpop.f32.mrb[0].mxu0
        %v962 = vadd.f32 %v256, %v961
        %v963 = vpop.f32.mrb[0].mxu0
        %964 = vmatprep.mubr.bf16.mxu0 0
        %965 = vmatmul.mubr.bf16.gmra.mrb[0].mxu0 %v916
        %v966 = vpop.f32.mrb[0].mxu0
        %v967 = vadd.f32 %v256, %v966
        %v968 = vpop.f32.mrb[0].mxu0
        %v969 = vpop.f32.mrb[0].mxu0
        %v970 = vpop.f32.mrb[0].mxu0
        %971 = vdwg.mxu0
        %v972 = vsel %vm475, %v959, -inf
        %973 = vmax.xlane.f32.xlu0 %v972
        %v974 = vpop.xlane.xlu0 %973
        %v975 = vsel %vm475, %v962, -inf
        %976 = vmax.xlane.f32.xlu0 %v975
        %v977 = vpop.xlane.xlu0 %976
        %v978 = vsel %vm475, %v967, -inf
        %979 = vmax.xlane.f32.xlu0 %v978
        %v980 = vpop.xlane.xlu0 %979
        %v981 = vsub.f32 %v959, %v974
        %v982 = vsub.f32 %v962, %v977
        %v983 = vsub.f32 %v967, %v980
        %v984 = vmul.f32 %v981, 1.442695
        %v985 = vpow.pop %v984
        %v986 = vmul.f32 %v982, 1.442695
        %v987 = vpow.pop %v986
        %v988 = vmul.f32 %v983, 1.442695
        %v989 = vpow.pop %v988
        %v990 = vsel %vm475, %v985, 0.0
        %991 = vadd.xlane.f32.xlu0 %v990
        %v992 = vpop.xlane.xlu0 %991
        %v993 = vsel %vm475, %v987, 0.0
        %994 = vadd.xlane.f32.xlu0 %v993
        %v995 = vpop.xlane.xlu0 %994
        %v996 = vsel %vm475, %v989, 0.0
        %997 = vadd.xlane.f32.xlu0 %v996
        %v998 = vpop.xlane.xlu0 %997
        %v999 = vrcp.pop %v992
        %v1000 = vrcp.pop %v995
        %v1001 = vrcp.pop %v998
        %v1002 = vmul.f32 %v985, %v999
        %v1003 = vmul.f32 %v987, %v1000
        %v1004 = vmul.f32 %v989, %v1001
        %v1005 = vpack.c.bf16 %v1003, %v1002
        %v1006 = vpack.c.bf16 %v1004, %v1004
        %1007 = vrot.lane.b32.xlu0 %v406, 40
        %v1008 = vpop.permute.xlu0 %1007
        %1009 = vrot.lane.b32.xlu0 %v407, 40
        %v1010 = vpop.permute.xlu0 %1009
        %v1013 = vsel %vm475, %v1005, 0
        %v1016 = vsel %vm475, %v1006, 0
        %v1019 = vsel %vm522, %v1010, 0
        %1021 = vmatprep.subr.bf16.mxu0 0
        %1022 = vmatpush1.bf16.msra.mxu0 %v1008
        %1023 = vmatprep.subr.bf16.mxu0 0
        %1024 = vmatpush1.bf16.msra.mxu0 %v1019
        %1025 = vmatprep.subr.bf16.mxu0 0
        %1026 = vmatpush1.bf16.msra.mxu0 0
        %1027 = vmatprep.subr.bf16.mxu0 0
        %1028 = vmatpush1.bf16.msra.mxu0 0
        %1029 = vmatprep.subr.bf16.mxu0 0
        %1030 = vmatpush1.bf16.msra.mxu0 0
        %1031 = vmatprep.subr.bf16.mxu0 0
        %1032 = vmatpush1.bf16.msra.mxu0 0
        %1033 = vmatprep.subr.bf16.mxu0 0
        %1034 = vmatpush1.bf16.msra.mxu0 0
        %1035 = vmatprep.subr.bf16.mxu0 0
        %1036 = vmatpush1.bf16.msra.mxu0 0
        %1037 = vmatprep.subr.bf16.mxu0 0
        %1038 = vmatpush1.bf16.msra.mxu0 0
        %1039 = vmatprep.subr.bf16.mxu0 0
        %1040 = vmatpush1.bf16.msra.mxu0 0
        %1041 = vmatprep.subr.bf16.mxu0 0
        %1042 = vmatpush1.bf16.msra.mxu0 0
        %1043 = vmatprep.subr.bf16.mxu0 0
        %1044 = vmatpush1.bf16.msra.mxu0 0
        %1045 = vmatprep.subr.bf16.mxu0 0
        %1046 = vmatpush1.bf16.msra.mxu0 0
        %1047 = vmatprep.subr.bf16.mxu0 0
        %1048 = vmatpush1.bf16.msra.mxu0 0
        %1049 = vmatprep.subr.bf16.mxu0 0
        %1050 = vmatpush1.bf16.msra.mxu0 0
        %1051 = vmatprep.subr.bf16.mxu0 0
        %1052 = vmatpush1.bf16.msra.mxu0 0
        %1053 = vmatprep.mubr.bf16.mxu0 0
        %1054 = vmatmul.mubr.bf16.gmra.mrb[0].mxu0 %v1013
        %v1055 = vpop.f32.mrb[0].mxu0
        %v1056 = vadd.f32 0.0, %v1055
        %v1057 = vpop.f32.mrb[0].mxu0
        %v1058 = vpop.f32.mrb[0].mxu0
        %v1059 = vadd.f32 0.0, %v1058
        %v1060 = vpop.f32.mrb[0].mxu0
        %1061 = vmatprep.mubr.bf16.mxu0 0
        %1062 = vmatmul.mubr.bf16.gmra.mrb[0].mxu0 %v1016
        %v1063 = vpop.f32.mrb[0].mxu0
        %v1064 = vadd.f32 0.0, %v1063
        %v1065 = vpop.f32.mrb[0].mxu0
        %v1066 = vpop.f32.mrb[0].mxu0
        %v1067 = vpop.f32.mrb[0].mxu0
        %1068 = vdwg.mxu0
        %1072 = vrot.lane.b32.xlu0 %v726, 8
        %v1073 = vpop.permute.xlu0 %1072
        %1074 = vrot.lane.b32.xlu0 %v729, 8
        %v1075 = vpop.permute.xlu0 %1074
        %1076 = vrot.lane.b32.xlu0 %v734, 8
        %v1077 = vpop.permute.xlu0 %1076
        %1084 = vrot.lane.b32.xlu0 %v891, 16
        %v1085 = vpop.permute.xlu0 %1084
        %1086 = vrot.lane.b32.xlu0 %v894, 16
        %v1087 = vpop.permute.xlu0 %1086
        %1088 = vrot.lane.b32.xlu0 %v899, 16
        %v1089 = vpop.permute.xlu0 %1088
        %1096 = vrot.lane.b32.xlu0 %v1056, 24
        %v1097 = vpop.permute.xlu0 %1096
        %1098 = vrot.lane.b32.xlu0 %v1059, 24
        %v1099 = vpop.permute.xlu0 %1098
        %1100 = vrot.lane.b32.xlu0 %v1064, 24
        %v1101 = vpop.permute.xlu0 %1100
        %v1105 = vsel %vm414, %v561, %v1073
        %v1106 = vsel %vm414, %v564, %v1075
        %v1107 = vsel %vm414, %v569, %v1077
        %vm1108 = vcmask 130048
        %v1109 = vsel %vm1108, %v1105, %v1085
        %v1110 = vsel %vm1108, %v1106, %v1087
        %v1111 = vsel %vm1108, %v1107, %v1089
        %v1112 = vsel %vm475, %v1109, %v1097
        %v1113 = vsel %vm475, %v1110, %v1099
        %v1114 = vsel %vm475, %v1111, %v1101
        %v1115 = vpack.c.bf16 %v1113, %v1112
        %v1116 = vpack.c.bf16 %v1114, %v1114
        %s1117 = smul.addr %s329, 4
        %s1118 = scalar_lea.vmem %s2, %s1117
        %v1119 = vld [vmem:[%s1118] sm:$0xf]
        %v1120 = vld [vmem:[%s1118 + $0x4] sm:$0xf]
        %v1121 = vld [vmem:[%s1118 + $0x8] sm:$0xf]
        %v1122 = vld [vmem:[%s1118 + $0xc] sm:$0xf]
        %v1127 = vunpack.c.l.b16 %v1119
        %v1128 = vunpack.c.l.b16 %v1120
        %v1129 = vunpack.c.l.b16 %v1121
        %v1130 = vunpack.c.l.b16 %v1122
        %v1131 = vpack.c.b16 %v1128, %v1127
        %v1132 = vpack.c.b16 %v1130, %v1129
        %v1136 = vsel %vm272, %v1115, 0
        %v1139 = vsel %vm272, %v1116, 0
        %1141 = vmatprep.subr.bf16.mxu0 0
        %1142 = vmatpush1.bf16.msra.mxu0 %v1131
        %1143 = vmatprep.subr.bf16.mxu0 0
        %1144 = vmatpush1.bf16.msra.mxu0 %v1132
        %1145 = vmatprep.subr.bf16.mxu0 0
        %1146 = vmatpush1.bf16.msra.mxu0 0
        %1147 = vmatprep.subr.bf16.mxu0 0
        %1148 = vmatpush1.bf16.msra.mxu0 0
        %1149 = vmatprep.subr.bf16.mxu0 0
        %1150 = vmatpush1.bf16.msra.mxu0 0
        %1151 = vmatprep.subr.bf16.mxu0 0
        %1152 = vmatpush1.bf16.msra.mxu0 0
        %1153 = vmatprep.subr.bf16.mxu0 0
        %1154 = vmatpush1.bf16.msra.mxu0 0
        %1155 = vmatprep.subr.bf16.mxu0 0
        %1156 = vmatpush1.bf16.msra.mxu0 0
        %1157 = vmatprep.subr.bf16.mxu0 0
        %1158 = vmatpush1.bf16.msra.mxu0 0
        %1159 = vmatprep.subr.bf16.mxu0 0
        %1160 = vmatpush1.bf16.msra.mxu0 0
        %1161 = vmatprep.subr.bf16.mxu0 0
        %1162 = vmatpush1.bf16.msra.mxu0 0
        %1163 = vmatprep.subr.bf16.mxu0 0
        %1164 = vmatpush1.bf16.msra.mxu0 0
        %1165 = vmatprep.subr.bf16.mxu0 0
        %1166 = vmatpush1.bf16.msra.mxu0 0
        %1167 = vmatprep.subr.bf16.mxu0 0
        %1168 = vmatpush1.bf16.msra.mxu0 0
        %1169 = vmatprep.subr.bf16.mxu0 0
        %1170 = vmatpush1.bf16.msra.mxu0 0
        %1171 = vmatprep.subr.bf16.mxu0 0
        %1172 = vmatpush1.bf16.msra.mxu0 0
        %1173 = vmatprep.mubr.bf16.mxu0 0
        %1174 = vmatmul.mubr.bf16.gmra.mrb[0].mxu0 %v1136
        %v1175 = vpop.f32.mrb[0].mxu0
        %v1176 = vadd.f32 0.0, %v1175
        %v1177 = vpop.f32.mrb[0].mxu0
        %v1178 = vpop.f32.mrb[0].mxu0
        %v1179 = vadd.f32 0.0, %v1178
        %v1180 = vpop.f32.mrb[0].mxu0
        %1181 = vmatprep.mubr.bf16.mxu0 0
        %1182 = vmatmul.mubr.bf16.gmra.mrb[0].mxu0 %v1139
        %v1183 = vpop.f32.mrb[0].mxu0
        %v1184 = vadd.f32 0.0, %v1183
        %v1185 = vpop.f32.mrb[0].mxu0
        %v1186 = vpop.f32.mrb[0].mxu0
        %v1187 = vpop.f32.mrb[0].mxu0
        %1188 = vdwg.mxu0
        %v1189 = vadd.f32 %v266, %v1176
        %v1190 = vadd.f32 %v267, %v1179
        %v1191 = vadd.f32 %v268, %v1184
        %v1192 = vlaneseq
        %v1193 = vshrl.u32 %v1192, 7
        %v1194 = vsub.s32 3, %v1193
        %v1195 = vrot.slane %v271, %v1194
        %v1196 = vadd.f32 %v1189, %v1195
        %v1197 = vadd.f32 %v1190, %v1195
        %v1198 = vadd.f32 %v1191, %v1195
        %v1199 = vsel %vm272, %v1196, 0.0
        %1200 = vadd.xlane.f32.xlu0 %v1199
        %v1201 = vpop.xlane.xlu0 %1200
        %v1202 = vsel %vm272, %v1197, 0.0
        %1203 = vadd.xlane.f32.xlu0 %v1202
        %v1204 = vpop.xlane.xlu0 %1203
        %v1205 = vsel %vm272, %v1198, 0.0
        %1206 = vadd.xlane.f32.xlu0 %v1205
        %v1207 = vpop.xlane.xlu0 %1206
        %v1208 = vmul.f32 %v1201, %v282
        %v1209 = vmul.f32 %v1204, %v282
        %v1210 = vmul.f32 %v1207, %v282
        %v1211 = vsub.f32 %v1196, %v1208
        %v1212 = vsub.f32 %v1197, %v1209
        %v1213 = vsub.f32 %v1198, %v1210
        %v1214 = vmul.f32 %v1211, %v1211
        %v1215 = vmul.f32 %v1212, %v1212
        %v1216 = vmul.f32 %v1213, %v1213
        %v1217 = vsel %vm272, %v1214, 0.0
        %1218 = vadd.xlane.f32.xlu0 %v1217
        %v1219 = vpop.xlane.xlu0 %1218
        %v1220 = vsel %vm272, %v1215, 0.0
        %1221 = vadd.xlane.f32.xlu0 %v1220
        %v1222 = vpop.xlane.xlu0 %1221
        %v1223 = vsel %vm272, %v1216, 0.0
        %1224 = vadd.xlane.f32.xlu0 %v1223
        %v1225 = vpop.xlane.xlu0 %1224
        %v1226 = vmul.f32 %v1219, %v282
        %v1227 = vmul.f32 %v1222, %v282
        %v1228 = vmul.f32 %v1225, %v282
        %v1229 = vadd.f32 %v1226, 1e-05
        %v1230 = vadd.f32 %v1227, 1e-05
        %v1231 = vadd.f32 %v1228, 1e-05
        %v1232 = vrsqrt.pop %v1229
        %v1233 = vrsqrt.pop %v1230
        %v1234 = vrsqrt.pop %v1231
        %v1235 = vmul.f32 %v1211, %v1232
        %v1236 = vmul.f32 %v1212, %v1233
        %v1237 = vmul.f32 %v1213, %v1234
        %v1238 = vlaneseq
        %v1239 = vshrl.u32 %v1238, 7
        %v1240 = vsub.s32 4, %v1239
        %v1241 = vrot.slane %v271, %v1240
        %v1242 = vmul.f32 %v1235, %v1241
        %v1243 = vmul.f32 %v1236, %v1241
        %v1244 = vmul.f32 %v1237, %v1241
        %v1245 = vlaneseq
        %v1246 = vshrl.u32 %v1245, 7
        %v1247 = vsub.s32 5, %v1246
        %v1248 = vrot.slane %v271, %v1247
        %v1249 = vadd.f32 %v1242, %v1248
        %v1250 = vadd.f32 %v1243, %v1248
        %v1251 = vadd.f32 %v1244, %v1248
        %v1252 = vpack.c.bf16 %v1250, %v1249
        %v1253 = vpack.c.bf16 %v1251, %v1251
        %s1254 = smul.addr %s329, 4
        %s1255 = scalar_lea.vmem %s3, %s1254
        %v1256 = vld [vmem:[%s1255] sm:$0xf]
        %v1257 = vld [vmem:[%s1255 + $0x4] sm:$0xf]
        %v1258 = vld [vmem:[%s1255 + $0x8] sm:$0xf]
        %v1259 = vld [vmem:[%s1255 + $0xc] sm:$0xf]
        %v1260 = vlaneseq
        %v1261 = vshrl.u32 %v1260, 7
        %v1262 = vsub.s32 6, %v1261
        %v1263 = vrot.slane %v271, %v1262
        %v1268 = vunpack.c.l.b16 %v1256
        %v1269 = vunpack.c.l.b16 %v1257
        %v1270 = vunpack.c.l.b16 %v1258
        %v1271 = vunpack.c.l.b16 %v1259
        %v1272 = vpack.c.b16 %v1269, %v1268
        %v1273 = vpack.c.b16 %v1271, %v1270
        %v1277 = vsel %vm272, %v1252, 0
        %v1280 = vsel %vm272, %v1253, 0
        %1282 = vmatprep.subr.bf16.mxu0 0
        %1283 = vmatpush1.bf16.msra.mxu0 %v1272
        %1284 = vmatprep.subr.bf16.mxu0 0
        %1285 = vmatpush1.bf16.msra.mxu0 %v1273
        %1286 = vmatprep.subr.bf16.mxu0 0
        %1287 = vmatpush1.bf16.msra.mxu0 0
        %1288 = vmatprep.subr.bf16.mxu0 0
        %1289 = vmatpush1.bf16.msra.mxu0 0
        %1290 = vmatprep.subr.bf16.mxu0 0
        %1291 = vmatpush1.bf16.msra.mxu0 0
        %1292 = vmatprep.subr.bf16.mxu0 0
        %1293 = vmatpush1.bf16.msra.mxu0 0
        %1294 = vmatprep.subr.bf16.mxu0 0
        %1295 = vmatpush1.bf16.msra.mxu0 0
        %1296 = vmatprep.subr.bf16.mxu0 0
        %1297 = vmatpush1.bf16.msra.mxu0 0
        %1298 = vmatprep.subr.bf16.mxu0 0
        %1299 = vmatpush1.bf16.msra.mxu0 0
        %1300 = vmatprep.subr.bf16.mxu0 0
        %1301 = vmatpush1.bf16.msra.mxu0 0
        %1302 = vmatprep.subr.bf16.mxu0 0
        %1303 = vmatpush1.bf16.msra.mxu0 0
        %1304 = vmatprep.subr.bf16.mxu0 0
        %1305 = vmatpush1.bf16.msra.mxu0 0
        %1306 = vmatprep.subr.bf16.mxu0 0
        %1307 = vmatpush1.bf16.msra.mxu0 0
        %1308 = vmatprep.subr.bf16.mxu0 0
        %1309 = vmatpush1.bf16.msra.mxu0 0
        %1310 = vmatprep.subr.bf16.mxu0 0
        %1311 = vmatpush1.bf16.msra.mxu0 0
        %1312 = vmatprep.subr.bf16.mxu0 0
        %1313 = vmatpush1.bf16.msra.mxu0 0
        %1314 = vmatprep.mubr.bf16.mxu0 0
        %1315 = vmatmul.mubr.bf16.gmra.mrb[0].mxu0 %v1277
        %v1316 = vpop.f32.mrb[0].mxu0
        %v1317 = vadd.f32 %v1263, %v1316
        %v1318 = vpop.f32.mrb[0].mxu0
        %v1319 = vpop.f32.mrb[0].mxu0
        %v1320 = vadd.f32 %v1263, %v1319
        %v1321 = vpop.f32.mrb[0].mxu0
        %1322 = vmatprep.mubr.bf16.mxu0 0
        %1323 = vmatmul.mubr.bf16.gmra.mrb[0].mxu0 %v1280
        %v1324 = vpop.f32.mrb[0].mxu0
        %v1325 = vadd.f32 %v1263, %v1324
        %v1326 = vpop.f32.mrb[0].mxu0
        %v1327 = vpop.f32.mrb[0].mxu0
        %v1328 = vpop.f32.mrb[0].mxu0
        %1329 = vdwg.mxu0
        %v1330 = vmul.f32 %v1317, 1.702
        %v1331 = vmul.f32 %v1320, 1.702
        %v1332 = vmul.f32 %v1325, 1.702
        %v1333 = vxor.u32 %v1330, 2147483648
        %v1334 = vxor.u32 %v1331, 2147483648
        %v1335 = vxor.u32 %v1332, 2147483648
        %v1336 = vmul.f32 %v1333, 1.442695
        %v1337 = vpow.pop %v1336
        %v1338 = vmul.f32 %v1334, 1.442695
        %v1339 = vpow.pop %v1338
        %v1340 = vmul.f32 %v1335, 1.442695
        %v1341 = vpow.pop %v1340
        %v1342 = vadd.f32 %v1337, 1.0
        %v1343 = vadd.f32 %v1339, 1.0
        %v1344 = vadd.f32 %v1341, 1.0
        %v1345 = vrcp.pop %v1342
        %v1346 = vmul.f32 1.0, %v1345
        %v1347 = vrcp.pop %v1343
        %v1348 = vmul.f32 1.0, %v1347
        %v1349 = vrcp.pop %v1344
        %v1350 = vmul.f32 1.0, %v1349
        %v1351 = vmul.f32 %v1317, %v1346
        %v1352 = vmul.f32 %v1320, %v1348
        %v1353 = vmul.f32 %v1325, %v1350
        %v1354 = vpack.c.bf16 %v1352, %v1351
        %v1355 = vpack.c.bf16 %v1353, %v1353
        %s1356 = smul.u32 %s261, 16
        %s1357 = smul.addr %s1356, 4
        %s1358 = scalar_lea.vmem %s4, %s1357
        %v1359 = vld [vmem:[%s1358] sm:$0xf]
        %v1360 = vld [vmem:[%s1358 + $0x4] sm:$0xf]
        %v1361 = vld [vmem:[%s1358 + $0x8] sm:$0xf]
        %v1362 = vld [vmem:[%s1358 + $0xc] sm:$0xf]
        %v1363 = vld [vmem:[%s1358 + $0x10] sm:$0xf]
        %v1364 = vld [vmem:[%s1358 + $0x14] sm:$0xf]
        %v1365 = vld [vmem:[%s1358 + $0x18] sm:$0xf]
        %v1366 = vld [vmem:[%s1358 + $0x1c] sm:$0xf]
        %v1367 = vld [vmem:[%s1358 + $0x20] sm:$0xf]
        %v1368 = vld [vmem:[%s1358 + $0x24] sm:$0xf]
        %v1369 = vld [vmem:[%s1358 + $0x28] sm:$0xf]
        %v1370 = vld [vmem:[%s1358 + $0x2c] sm:$0xf]
        %v1371 = vld [vmem:[%s1358 + $0x30] sm:$0xf]
        %v1372 = vld [vmem:[%s1358 + $0x34] sm:$0xf]
        %v1373 = vld [vmem:[%s1358 + $0x38] sm:$0xf]
        %v1374 = vld [vmem:[%s1358 + $0x3c] sm:$0xf]
        %v1391 = vunpack.c.l.b16 %v1359
        %v1392 = vunpack.c.l.b16 %v1360
        %v1393 = vunpack.c.l.b16 %v1361
        %v1394 = vunpack.c.l.b16 %v1362
        %v1395 = vunpack.c.l.b16 %v1363
        %v1396 = vunpack.c.l.b16 %v1364
        %v1397 = vunpack.c.l.b16 %v1365
        %v1398 = vunpack.c.l.b16 %v1366
        %v1399 = vunpack.c.l.b16 %v1367
        %v1400 = vunpack.c.l.b16 %v1368
        %v1401 = vunpack.c.l.b16 %v1369
        %v1402 = vunpack.c.l.b16 %v1370
        %v1403 = vunpack.c.l.b16 %v1371
        %v1404 = vunpack.c.l.b16 %v1372
        %v1405 = vunpack.c.l.b16 %v1373
        %v1406 = vunpack.c.l.b16 %v1374
        %v1407 = vpack.c.b16 %v1392, %v1391
        %v1408 = vpack.c.b16 %v1394, %v1393
        %v1409 = vpack.c.b16 %v1396, %v1395
        %v1410 = vpack.c.b16 %v1398, %v1397
        %v1411 = vpack.c.b16 %v1400, %v1399
        %v1412 = vpack.c.b16 %v1402, %v1401
        %v1413 = vpack.c.b16 %v1404, %v1403
        %v1414 = vpack.c.b16 %v1406, %v1405
        %1423 = vmatprep.subr.bf16.mxu0 0
        %1424 = vmatpush1.bf16.msra.mxu0 %v1407
        %1425 = vmatprep.subr.bf16.mxu0 0
        %1426 = vmatpush1.bf16.msra.mxu0 %v1408
        %1427 = vmatprep.subr.bf16.mxu0 0
        %1428 = vmatpush1.bf16.msra.mxu0 %v1409
        %1429 = vmatprep.subr.bf16.mxu0 0
        %1430 = vmatpush1.bf16.msra.mxu0 %v1410
        %1431 = vmatprep.subr.bf16.mxu0 0
        %1432 = vmatpush1.bf16.msra.mxu0 %v1411
        %1433 = vmatprep.subr.bf16.mxu0 0
        %1434 = vmatpush1.bf16.msra.mxu0 %v1412
        %1435 = vmatprep.subr.bf16.mxu0 0
        %1436 = vmatpush1.bf16.msra.mxu0 %v1413
        %1437 = vmatprep.subr.bf16.mxu0 0
        %1438 = vmatpush1.bf16.msra.mxu0 %v1414
        %1439 = vmatprep.subr.bf16.mxu0 0
        %1440 = vmatpush1.bf16.msra.mxu0 0
        %1441 = vmatprep.subr.bf16.mxu0 0
        %1442 = vmatpush1.bf16.msra.mxu0 0
        %1443 = vmatprep.subr.bf16.mxu0 0
        %1444 = vmatpush1.bf16.msra.mxu0 0
        %1445 = vmatprep.subr.bf16.mxu0 0
        %1446 = vmatpush1.bf16.msra.mxu0 0
        %1447 = vmatprep.subr.bf16.mxu0 0
        %1448 = vmatpush1.bf16.msra.mxu0 0
        %1449 = vmatprep.subr.bf16.mxu0 0
        %1450 = vmatpush1.bf16.msra.mxu0 0
        %1451 = vmatprep.subr.bf16.mxu0 0
        %1452 = vmatpush1.bf16.msra.mxu0 0
        %1453 = vmatprep.subr.bf16.mxu0 0
        %1454 = vmatpush1.bf16.msra.mxu0 0
        %1455 = vmatprep.mubr.bf16.mxu0 0
        %1456 = vmatmul.mubr.bf16.gmra.mrb[0].mxu0 %v1354
        %v1457 = vpop.f32.mrb[0].mxu0
        %v1458 = vadd.f32 0.0, %v1457
        %v1459 = vpop.f32.mrb[0].mxu0
        %v1460 = vpop.f32.mrb[0].mxu0
        %v1461 = vadd.f32 0.0, %v1460
        %v1462 = vpop.f32.mrb[0].mxu0
        %1463 = vmatprep.mubr.bf16.mxu0 0
        %1464 = vmatmul.mubr.bf16.gmra.mrb[0].mxu0 %v1355
        %v1465 = vpop.f32.mrb[0].mxu0
        %v1466 = vadd.f32 0.0, %v1465
        %v1467 = vpop.f32.mrb[0].mxu0
        %v1468 = vpop.f32.mrb[0].mxu0
        %v1469 = vpop.f32.mrb[0].mxu0
        %1470 = vdwg.mxu0
        %v1471 = vadd.f32 %v1196, %v1458
        %v1472 = vadd.f32 %v1197, %v1461
        %v1473 = vadd.f32 %v1198, %v1466
        %v1474 = vlaneseq
        %v1475 = vshrl.u32 %v1474, 7
        %v1476 = vsub.s32 7, %v1475
        %v1477 = vrot.slane %v271, %v1476
        %v1478 = vadd.f32 %v1471, %v1477
        %v1479 = vadd.f32 %v1472, %v1477
        %v1480 = vadd.f32 %v1473, %v1477
        %s1481 = smul.u32 %s261, 24
        %s1482 = scalar_lea.vmem %s251, %s1481
        %1483 = vst.msk [vmem:[%s1482] sm:$0xff] %vm272, %v1478
        %1484 = vst.msk [vmem:[%s1482 + $0x8] sm:$0xff] %vm272, %v1479
        %1485 = vst.msk [vmem:[%s1482 + $0x10] sm:$0xff] %vm272, %v1480
      $region49: #{clip_visual_encoder_forward.1} parent=43 // loop_footer
        %s265 = sadd.s32 1, %s261
      $region50: #{clip_visual_encoder_forward.1} parent=43 // loop_footer_branch
        %260 = sbr.rel target = $region46
      $region51: #{clip_visual_encoder_forward.1} parent=43 // loop_exit
        _
      %p1486 = scmp.lt.s32.totalorder %s17, 1
      %s1487 = scalar_select %p1486, %s17, 1
      %s1488 = smul.addr %s1487, 36
      %s1489 = smul.addr %s1488, 8
      %s1490 = scalar_lea.vmem %s6, %s1489
      // Predicated region
      $region52: #{clip_visual_encoder_forward.1} parent=43 // pred_check
        %p1491 = pneg %p166
      $region53: #{clip_visual_encoder_forward.1} parent=43 // pred_check_branch
        %1493 = sbr.rel (%p1491) target = $region55
      $region54: #{clip_visual_encoder_forward.1} parent=43 // pred_region
        _
      $region55: #{clip_visual_encoder_forward.1} parent=43 // pred_fallthru
        _
    $region44: #{clip_visual_encoder_forward.1} parent=5 // pred_fallthru
      _
    %p1494 = scmp.le.s32.totalorder 2, %s12
    // Predicated region
    $region56: #{clip_visual_encoder_forward.1} parent=5 // pred_check
      %p1495 = pneg %p1494
    $region57: #{clip_visual_encoder_forward.1} parent=5 // pred_check_branch
      %1497 = sbr.rel (%p1495) target = $region59
    $region58: #{clip_visual_encoder_forward.1} parent=5 // pred_region
      %s1498 = ssub.s32 %s12, 2
      // Predicated region
      $region60: #{clip_visual_encoder_forward.1} parent=58 // pred_check
        %p1499 = pneg %p172
      $region61: #{clip_visual_encoder_forward.1} parent=58 // pred_check_branch
        %1501 = sbr.rel (%p1499) target = $region63
      $region62: #{clip_visual_encoder_forward.1} parent=58 // pred_region
        %p1502 = scmp.lt.s32.totalorder %s18, 1
        %s1503 = scalar_select %p1502, %s18, 1
        %s1504 = smul.addr %s1503, 36
        %s1505 = smul.addr %s1504, 8
        %s1506 = scalar_lea.vmem %s6, %s1505
      $region63: #{clip_visual_encoder_forward.1} parent=58 // pred_fallthru
        _
    $region59: #{clip_visual_encoder_forward.1} parent=5 // pred_fallthru
      _
  $region6: #{clip_visual_encoder_forward.1} parent=0 // loop_footer
    %s16 = sadd.s32 1, %s12
  $region7: #{clip_visual_encoder_forward.1} parent=0 // loop_footer_branch
    %11 = sbr.rel target = $region3
  $region8: #{clip_visual_encoder_forward.1} parent=0 // loop_exit
    _

</llo_original>
